<compile_context>
chip_gen: v5e
topology: v5e:2x2
jax: 0.10.0
libtpu: 0.0.40
codegen_flags: <defaults>
</compile_context>

<pallas_src>
import math

import jax
import jax.numpy as jnp
from jax.experimental import pallas as pl
from jax.experimental.pallas import tpu as pltpu


# ----------------------------------------------------------------------------
# Fused Pallas kernel
# ----------------------------------------------------------------------------
def _make_dcbf_kernel(B, C, T, V, H, kt):
    TV = T * V
    Ch = C // 2
    pad = (kt - 1) // 2
    LOG2PI = math.log(2.0 * math.pi)
    DENOM = math.log(2.0) * (C * T * V)
    EPS = 1e-5

    def gather_rows(arr, rows):
        # static row permutation/selection via sublane concat of 1-row slices
        return jnp.concatenate([arr[r:r + 1, :] for r in rows], axis=0)

    def batchnorm(h, cout, gamma_r, beta_r):
        # BatchNorm2d, training mode: biased stats per channel over (B, T, V).
        # h: (B*cout, TV); per-channel reduce spans B row-blocks + all lanes.
        n = float(B * TV)
        rsum = jnp.sum(h, axis=1, keepdims=True)               # (B*cout, 1)
        csum = rsum[0:cout, :]
        for b in range(1, B):
            csum = csum + rsum[b * cout:(b + 1) * cout, :]
        mean_r = jnp.concatenate([csum / n] * B, axis=0)        # (B*cout, 1)
        xc = h - mean_r
        ssum = jnp.sum(xc * xc, axis=1, keepdims=True)
        vsum = ssum[0:cout, :]
        for b in range(1, B):
            vsum = vsum + ssum[b * cout:(b + 1) * cout, :]
        var_r = jnp.concatenate([vsum / n] * B, axis=0)
        return xc * jax.lax.rsqrt(var_r + EPS) * gamma_r + beta_r

    def kernel(x_ref, anb_ref, ans_ref, anld_ref, mg_ref,
               w1g_ref, b1g_ref, g1a_ref, be1a_ref,
               w1t_ref, b1t_ref, g1b_ref, be1b_ref,
               w2g_ref, b2g_ref, g2a_ref, be2a_ref,
               w2t_ref, b2t_ref, g2b_ref, be2b_ref,
               z_ref, nll_ref):
        x = x_ref[...]                                # (B*C, TV)
        mg = mg_ref[...]                              # (TV, TV) = kron(I_T, A)

        # --- ActNorm2d (initialized): (x + bias) * exp(logs) ---------------
        y = (x + anb_ref[...]) * ans_ref[...]

        # --- Permute2d(reverse) + split_feature('split') as row gathers ----
        z1 = gather_rows(y, [b * C + (C - 1 - j) for b in range(B) for j in range(Ch)])
        z2 = gather_rows(y, [b * C + (Ch - 1 - j) for b in range(B) for j in range(Ch)])

        # --- st_gcn block (residual=False since first=True) ----------------
        def stgcn(h_in, cout, wg_ref, bg_ref, g1_ref, be1_ref,
                  wt_ref, bt_ref, g2_ref, be2_ref):
            # ConvTemporalGraphical: 1x1 conv, batch folded block-diagonally
            h = jnp.dot(wg_ref[...], h_in,
                        preferred_element_type=jnp.float32) + bg_ref[...]
            # graph contraction einsum('nctv,vw->nctw') == h @ kron(I_T, A)
            h = jnp.dot(h, mg, preferred_element_type=jnp.float32)
            # tcn: BN (batch stats) + ReLU
            h = jnp.maximum(batchnorm(h, cout, g1_ref[...], be1_ref[...]), 0.0)
            # temporal (kt,1) conv: zero-pad T (along lanes), stack the kt
            # shifted slabs on the sublane axis, contract with one matmul
            zp = jnp.zeros((B * cout, pad * V), jnp.float32)
            hp = jnp.concatenate([zp, h, zp], axis=1)          # (B*cout, (T+2p)*V)
            hcat = jnp.concatenate(
                [hp[:, dt * V: dt * V + TV] for dt in range(kt)], axis=0)
            h = jnp.dot(wt_ref[...], hcat,
                        preferred_element_type=jnp.float32) + bt_ref[...]
            # BN2 (+ residual == 0) + final ReLU
            h = jnp.maximum(batchnorm(h, cout, g2_ref[...], be2_ref[...]), 0.0)
            return h

        h = stgcn(z1, H, w1g_ref, b1g_ref, g1a_ref, be1a_ref,
                  w1t_ref, b1t_ref, g1b_ref, be1b_ref)          # (B*H, TV)
        h = stgcn(h, C, w2g_ref, b2g_ref, g2a_ref, be2a_ref,
                  w2t_ref, b2t_ref, g2b_ref, be2b_ref)          # (B*C, TV)

        # --- affine coupling: split_feature(h, 'cross') ---------------------
        shift = gather_rows(h, [b * C + 2 * j for b in range(B) for j in range(Ch)])
        scale_raw = gather_rows(h, [b * C + 2 * j + 1 for b in range(B) for j in range(Ch)])
        scale = 1.0 / (1.0 + jnp.exp(-(scale_raw + 2.0))) + 1e-6   # sigmoid(x+2)+1e-6
        z2n = (z2 + shift) * scale
        log_scale = jnp.log(scale)

        # --- z = cat(z1, z2_new) along channels, per batch ------------------
        zout = jnp.concatenate(
            [jnp.concatenate([z1[b * Ch:(b + 1) * Ch, :],
                              z2n[b * Ch:(b + 1) * Ch, :]], axis=0)
             for b in range(B)], axis=0)                       # (B*C, TV)
        z_ref[...] = zout

        # --- prior (mean = logs = 0) + NLL ----------------------------------
        anld = anld_ref[...]                                   # (1, 1): T*V*sum(logs)
        nll_rows = []
        for b in range(B):
            ls = jnp.sum(log_scale[b * Ch:(b + 1) * Ch, :], axis=1, keepdims=True)
            ls = jnp.sum(ls, axis=0, keepdims=True)            # (1, 1)
            zb = zout[b * C:(b + 1) * C, :]
            zz = jnp.sum(zb * zb, axis=1, keepdims=True)
            zz = jnp.sum(zz, axis=0, keepdims=True)            # (1, 1)
            obj = anld + ls - 0.5 * (zz + C * TV * LOG2PI)
            nll_rows.append(-obj / DENOM)
        nll_ref[...] = jnp.concatenate(nll_rows, axis=0)        # (B, 1)

    return kernel


# ----------------------------------------------------------------------------
# DCBF forward (normal_flow) wrapper
# ----------------------------------------------------------------------------
def dcbf_normal_flow(x, params):
    B, C, T, V = x.shape
    TV = T * V
    Ch = C // 2

    A = params["A"].astype(jnp.float32)               # (Ks, V, V); Ks == 1 here
    # TODO(synk): Ks > 1 graph partition strategies not implemented.
    Mg = jnp.kron(jnp.eye(T, dtype=jnp.float32), A[0])          # (TV, TV)

    def rows(v):                                      # per-channel -> (B*len, 1)
        return jnp.tile(jnp.asarray(v, jnp.float32), (B,)).reshape(-1, 1)

    p1, p2 = params["block"]
    H = p1["tcn_w"].shape[0]
    kt = p1["tcn_w"].shape[2]
    eyeB = jnp.eye(B, dtype=jnp.float32)

    def prep(p, cin, cout):
        wg = p["gcn_w"].astype(jnp.float32).reshape(cout, cin)          # Ks = 1
        wt = p["tcn_w"].astype(jnp.float32)[:, :, :, 0]                 # (cout,cout,kt)
        return dict(
            wg=jnp.kron(eyeB, wg),                                      # (B*cout, B*cin)
            bg=rows(p["gcn_b"]),
            g1=rows(p["bn1_gamma"]), be1=rows(p["bn1_beta"]),
            wt=jnp.concatenate([jnp.kron(eyeB, wt[:, :, dt]) for dt in range(kt)],
                               axis=1),                                 # (B*cout, kt*B*cout)
            bt=rows(p["tcn_b"]),
            g2=rows(p["bn2_gamma"]), be2=rows(p["bn2_beta"]),
        )

    q1 = prep(p1, Ch, H)
    q2 = prep(p2, H, C)

    x2 = x.astype(jnp.float32).reshape(B * C, TV)               # free contiguous reshape
    anb = rows(params["actnorm_bias"])
    ans = rows(jnp.exp(params["actnorm_logs"].astype(jnp.float32)))
    anld = (float(TV) * jnp.sum(params["actnorm_logs"].astype(jnp.float32))).reshape(1, 1)

    kernel = _make_dcbf_kernel(B, C, T, V, H, kt)
    vmem = pl.BlockSpec(memory_space=pltpu.MemorySpace.VMEM)
    ins = (x2, anb, ans, anld, Mg,
           q1["wg"], q1["bg"], q1["g1"], q1["be1"], q1["wt"], q1["bt"], q1["g2"], q1["be2"],
           q2["wg"], q2["bg"], q2["g1"], q2["be1"], q2["wt"], q2["bt"], q2["g2"], q2["be2"])

    z2d, nll = pl.pallas_call(
        kernel,
        in_specs=[vmem] * len(ins),
        out_specs=[vmem, vmem],
        out_shape=[jax.ShapeDtypeStruct((B * C, TV), jnp.float32),
                   jax.ShapeDtypeStruct((B, 1), jnp.float32)],
    )(*ins)

    return z2d.reshape(B, C, T, V), nll[:, 0]


# ----------------------------------------------------------------------------
# Deterministic parameter construction (mirrors the PyTorch module config)
# ----------------------------------------------------------------------------
def init_params(key, C, T, V, hidden, kt):
    Ks = 1  # Graph(strategy='uniform') -> A has shape (1, V, V)
    keys = jax.random.split(key, 8)

    def unif(k, shape, scale):
        return scale * jax.random.uniform(k, shape, jnp.float32, -1.0, 1.0)

    def stgcn_params(k, cin, cout):
        ks = jax.random.split(k, 4)
        sg = 1.0 / math.sqrt(cin)
        st = 1.0 / math.sqrt(cout * kt)
        return dict(
            gcn_w=unif(ks[0], (Ks * cout, cin), sg),
            gcn_b=unif(ks[1], (Ks * cout,), sg),
            bn1_gamma=jnp.ones((cout,), jnp.float32),
            bn1_beta=jnp.zeros((cout,), jnp.float32),
            tcn_w=unif(ks[2], (cout, cout, kt, 1), st),
            tcn_b=unif(ks[3], (cout,), st),
            bn2_gamma=jnp.ones((cout,), jnp.float32),
            bn2_beta=jnp.zeros((cout,), jnp.float32),
        )

    return dict(
        actnorm_bias=0.1 * jax.random.normal(keys[0], (C,), jnp.float32),
        actnorm_logs=0.1 * jax.random.normal(keys[1], (C,), jnp.float32),
        # uniform-strategy Graph on a small fully-reachable skeleton -> 1/V matrix
        A=jnp.ones((Ks, V, V), jnp.float32) / V,
        block=[stgcn_params(keys[2], C // 2, hidden),
               stgcn_params(keys[3], hidden, C)],
    )


# ----------------------------------------------------------------------------
if __name__ == "__main__":
    B, C, T, V = 2, 4, 8, 8          # pose_shape = (C, T, V)
    hidden = 8
    kt = T // 2 + 1                   # FlowNet default temporal_kernel_size (=5)

    key = jax.random.PRNGKey(0)
    kx, kp = jax.random.split(key)
    x = jax.random.normal(kx, (B, C, T, V), jnp.float32)
    params = init_params(kp, C, T, V, hidden, kt)

    z, nll = jax.jit(dcbf_normal_flow)(x, params)
    jax.block_until_ready((z, nll))

    assert z.shape == (B, C, T, V) and nll.shape == (B,)
    assert bool(jnp.all(jnp.isfinite(z))) and bool(jnp.all(jnp.isfinite(nll)))
    print("KERNEL_OK")
</pallas_src>

<mosaic_0001>
module attributes {stable_mosaic.version = 11 : i64} {
  func.func @kernel(%arg0: memref<8x64xf32, #tpu.memory_space<vmem>>, %arg1: memref<8x1xf32, #tpu.memory_space<vmem>>, %arg2: memref<8x1xf32, #tpu.memory_space<vmem>>, %arg3: memref<1x1xf32, #tpu.memory_space<vmem>>, %arg4: memref<64x64xf32, #tpu.memory_space<vmem>>, %arg5: memref<16x4xf32, #tpu.memory_space<vmem>>, %arg6: memref<16x1xf32, #tpu.memory_space<vmem>>, %arg7: memref<16x1xf32, #tpu.memory_space<vmem>>, %arg8: memref<16x1xf32, #tpu.memory_space<vmem>>, %arg9: memref<16x80xf32, #tpu.memory_space<vmem>>, %arg10: memref<16x1xf32, #tpu.memory_space<vmem>>, %arg11: memref<16x1xf32, #tpu.memory_space<vmem>>, %arg12: memref<16x1xf32, #tpu.memory_space<vmem>>, %arg13: memref<8x16xf32, #tpu.memory_space<vmem>>, %arg14: memref<8x1xf32, #tpu.memory_space<vmem>>, %arg15: memref<8x1xf32, #tpu.memory_space<vmem>>, %arg16: memref<8x1xf32, #tpu.memory_space<vmem>>, %arg17: memref<8x40xf32, #tpu.memory_space<vmem>>, %arg18: memref<8x1xf32, #tpu.memory_space<vmem>>, %arg19: memref<8x1xf32, #tpu.memory_space<vmem>>, %arg20: memref<8x1xf32, #tpu.memory_space<vmem>>, %arg21: memref<8x64xf32, #tpu.memory_space<vmem>>, %arg22: memref<2x1xf32, #tpu.memory_space<vmem>>) attributes {dimension_semantics = [], scalar_prefetch = 0 : i64, scratch_operands = 0 : i64, tpu.core_type = #tpu.core_type<tc>} {
    %c0 = arith.constant 0 : index
    %c0_0 = arith.constant 0 : index
    %0 = vector.load %arg0[%c0, %c0_0] : memref<8x64xf32, #tpu.memory_space<vmem>>, vector<8x64xf32>
    %c0_1 = arith.constant 0 : index
    %c0_2 = arith.constant 0 : index
    %1 = vector.load %arg4[%c0_1, %c0_2] : memref<64x64xf32, #tpu.memory_space<vmem>>, vector<64x64xf32>
    %c0_3 = arith.constant 0 : index
    %c0_4 = arith.constant 0 : index
    %2 = vector.load %arg1[%c0_3, %c0_4] : memref<8x1xf32, #tpu.memory_space<vmem>>, vector<8x1xf32>
    %3 = vector.broadcast %2 : vector<8x1xf32> to vector<8x64xf32>
    %4 = arith.addf %0, %3 : vector<8x64xf32>
    %c0_5 = arith.constant 0 : index
    %c0_6 = arith.constant 0 : index
    %5 = vector.load %arg2[%c0_5, %c0_6] : memref<8x1xf32, #tpu.memory_space<vmem>>, vector<8x1xf32>
    %6 = vector.broadcast %5 : vector<8x1xf32> to vector<8x64xf32>
    %7 = arith.mulf %4, %6 : vector<8x64xf32>
    %8 = vector.extract_strided_slice %7 {offsets = [3, 0], sizes = [1, 64], strides = [1, 1]} : vector<8x64xf32> to vector<1x64xf32>
    %9 = vector.extract_strided_slice %7 {offsets = [2, 0], sizes = [1, 64], strides = [1, 1]} : vector<8x64xf32> to vector<1x64xf32>
    %10 = vector.extract_strided_slice %7 {offsets = [7, 0], sizes = [1, 64], strides = [1, 1]} : vector<8x64xf32> to vector<1x64xf32>
    %11 = vector.extract_strided_slice %7 {offsets = [6, 0], sizes = [1, 64], strides = [1, 1]} : vector<8x64xf32> to vector<1x64xf32>
    %12 = tpu.concatenate %8, %9, %10, %11 in 0 : vector<1x64xf32>, vector<1x64xf32>, vector<1x64xf32>, vector<1x64xf32> -> vector<4x64xf32>
    %13 = vector.extract_strided_slice %7 {offsets = [1, 0], sizes = [1, 64], strides = [1, 1]} : vector<8x64xf32> to vector<1x64xf32>
    %14 = vector.extract_strided_slice %7 {offsets = [0, 0], sizes = [1, 64], strides = [1, 1]} : vector<8x64xf32> to vector<1x64xf32>
    %15 = vector.extract_strided_slice %7 {offsets = [5, 0], sizes = [1, 64], strides = [1, 1]} : vector<8x64xf32> to vector<1x64xf32>
    %16 = vector.extract_strided_slice %7 {offsets = [4, 0], sizes = [1, 64], strides = [1, 1]} : vector<8x64xf32> to vector<1x64xf32>
    %17 = tpu.concatenate %13, %14, %15, %16 in 0 : vector<1x64xf32>, vector<1x64xf32>, vector<1x64xf32>, vector<1x64xf32> -> vector<4x64xf32>
    %c0_7 = arith.constant 0 : index
    %c0_8 = arith.constant 0 : index
    %18 = vector.load %arg5[%c0_7, %c0_8] : memref<16x4xf32, #tpu.memory_space<vmem>>, vector<16x4xf32>
    %cst = arith.constant dense<0.000000e+00> : vector<16x64xf32>
    %19 = tpu.matmul %18, %12, %cst {dimension_numbers = #tpu.dot_dimension_numbers<[1], [0], [0], [1], [0, 0, 1, 1], [], []>} : vector<16x4xf32>, vector<4x64xf32>, vector<16x64xf32> -> vector<16x64xf32>
    %c0_9 = arith.constant 0 : index
    %c0_10 = arith.constant 0 : index
    %20 = vector.load %arg6[%c0_9, %c0_10] : memref<16x1xf32, #tpu.memory_space<vmem>>, vector<16x1xf32>
    %21 = vector.broadcast %20 : vector<16x1xf32> to vector<16x64xf32>
    %22 = arith.addf %19, %21 : vector<16x64xf32>
    %cst_11 = arith.constant dense<0.000000e+00> : vector<16x64xf32>
    %23 = tpu.matmul %22, %1, %cst_11 {dimension_numbers = #tpu.dot_dimension_numbers<[1], [0], [0], [1], [0, 0, 1, 1], [], []>} : vector<16x64xf32>, vector<64x64xf32>, vector<16x64xf32> -> vector<16x64xf32>
    %c0_12 = arith.constant 0 : index
    %c0_13 = arith.constant 0 : index
    %24 = vector.load %arg7[%c0_12, %c0_13] : memref<16x1xf32, #tpu.memory_space<vmem>>, vector<16x1xf32>
    %c0_14 = arith.constant 0 : index
    %c0_15 = arith.constant 0 : index
    %25 = vector.load %arg8[%c0_14, %c0_15] : memref<16x1xf32, #tpu.memory_space<vmem>>, vector<16x1xf32>
    %cst_16 = arith.constant dense<0.000000e+00> : vector<16xf32>
    %26 = vector.multi_reduction <add>, %23, %cst_16 [1] : vector<16x64xf32> to vector<16xf32>
    %27 = vector.shape_cast %26 : vector<16xf32> to vector<16x1xf32>
    %28 = vector.extract_strided_slice %27 {offsets = [0, 0], sizes = [8, 1], strides = [1, 1]} : vector<16x1xf32> to vector<8x1xf32>
    %29 = vector.extract_strided_slice %27 {offsets = [8, 0], sizes = [8, 1], strides = [1, 1]} : vector<16x1xf32> to vector<8x1xf32>
    %30 = arith.addf %28, %29 : vector<8x1xf32>
    %cst_17 = arith.constant 1.280000e+02 : f32
    %31 = vector.broadcast %cst_17 : f32 to vector<8x1xf32>
    %32 = arith.divf %30, %31 : vector<8x1xf32>
    %33 = tpu.concatenate %32, %32 in 0 : vector<8x1xf32>, vector<8x1xf32> -> vector<16x1xf32>
    %34 = vector.broadcast %33 : vector<16x1xf32> to vector<16x64xf32>
    %35 = arith.subf %23, %34 : vector<16x64xf32>
    %36 = arith.mulf %35, %35 : vector<16x64xf32>
    %cst_18 = arith.constant dense<0.000000e+00> : vector<16xf32>
    %37 = vector.multi_reduction <add>, %36, %cst_18 [1] : vector<16x64xf32> to vector<16xf32>
    %38 = vector.shape_cast %37 : vector<16xf32> to vector<16x1xf32>
    %39 = vector.extract_strided_slice %38 {offsets = [0, 0], sizes = [8, 1], strides = [1, 1]} : vector<16x1xf32> to vector<8x1xf32>
    %40 = vector.extract_strided_slice %38 {offsets = [8, 0], sizes = [8, 1], strides = [1, 1]} : vector<16x1xf32> to vector<8x1xf32>
    %41 = arith.addf %39, %40 : vector<8x1xf32>
    %cst_19 = arith.constant 1.280000e+02 : f32
    %42 = vector.broadcast %cst_19 : f32 to vector<8x1xf32>
    %43 = arith.divf %41, %42 : vector<8x1xf32>
    %44 = tpu.concatenate %43, %43 in 0 : vector<8x1xf32>, vector<8x1xf32> -> vector<16x1xf32>
    %cst_20 = arith.constant 9.99999974E-6 : f32
    %45 = vector.broadcast %cst_20 : f32 to vector<16x1xf32>
    %46 = arith.addf %44, %45 : vector<16x1xf32>
    %47 = math.rsqrt %46 : vector<16x1xf32>
    %48 = vector.broadcast %47 : vector<16x1xf32> to vector<16x64xf32>
    %49 = arith.mulf %35, %48 : vector<16x64xf32>
    %50 = vector.broadcast %24 : vector<16x1xf32> to vector<16x64xf32>
    %51 = arith.mulf %49, %50 : vector<16x64xf32>
    %52 = vector.broadcast %25 : vector<16x1xf32> to vector<16x64xf32>
    %53 = arith.addf %51, %52 : vector<16x64xf32>
    %cst_21 = arith.constant 0.000000e+00 : f32
    %54 = vector.broadcast %cst_21 : f32 to vector<16x64xf32>
    %55 = arith.maximumf %53, %54 : vector<16x64xf32>
    %cst_22 = arith.constant 0.000000e+00 : f32
    %56 = vector.broadcast %cst_22 : f32 to vector<16x16xf32>
    %57 = tpu.concatenate %56, %55, %56 in 1 : vector<16x16xf32>, vector<16x64xf32>, vector<16x16xf32> -> vector<16x96xf32>
    %58 = vector.extract_strided_slice %57 {offsets = [0, 0], sizes = [16, 64], strides = [1, 1]} : vector<16x96xf32> to vector<16x64xf32>
    %59 = vector.extract_strided_slice %57 {offsets = [0, 8], sizes = [16, 64], strides = [1, 1]} : vector<16x96xf32> to vector<16x64xf32>
    %60 = vector.extract_strided_slice %57 {offsets = [0, 16], sizes = [16, 64], strides = [1, 1]} : vector<16x96xf32> to vector<16x64xf32>
    %61 = vector.extract_strided_slice %57 {offsets = [0, 24], sizes = [16, 64], strides = [1, 1]} : vector<16x96xf32> to vector<16x64xf32>
    %62 = vector.extract_strided_slice %57 {offsets = [0, 32], sizes = [16, 64], strides = [1, 1]} : vector<16x96xf32> to vector<16x64xf32>
    %63 = tpu.concatenate %58, %59, %60, %61, %62 in 0 : vector<16x64xf32>, vector<16x64xf32>, vector<16x64xf32>, vector<16x64xf32>, vector<16x64xf32> -> vector<80x64xf32>
    %c0_23 = arith.constant 0 : index
    %c0_24 = arith.constant 0 : index
    %64 = vector.load %arg9[%c0_23, %c0_24] : memref<16x80xf32, #tpu.memory_space<vmem>>, vector<16x80xf32>
    %cst_25 = arith.constant dense<0.000000e+00> : vector<16x64xf32>
    %65 = tpu.matmul %64, %63, %cst_25 {dimension_numbers = #tpu.dot_dimension_numbers<[1], [0], [0], [1], [0, 0, 1, 1], [], []>} : vector<16x80xf32>, vector<80x64xf32>, vector<16x64xf32> -> vector<16x64xf32>
    %c0_26 = arith.constant 0 : index
    %c0_27 = arith.constant 0 : index
    %66 = vector.load %arg10[%c0_26, %c0_27] : memref<16x1xf32, #tpu.memory_space<vmem>>, vector<16x1xf32>
    %67 = vector.broadcast %66 : vector<16x1xf32> to vector<16x64xf32>
    %68 = arith.addf %65, %67 : vector<16x64xf32>
    %c0_28 = arith.constant 0 : index
    %c0_29 = arith.constant 0 : index
    %69 = vector.load %arg11[%c0_28, %c0_29] : memref<16x1xf32, #tpu.memory_space<vmem>>, vector<16x1xf32>
    %c0_30 = arith.constant 0 : index
    %c0_31 = arith.constant 0 : index
    %70 = vector.load %arg12[%c0_30, %c0_31] : memref<16x1xf32, #tpu.memory_space<vmem>>, vector<16x1xf32>
    %cst_32 = arith.constant dense<0.000000e+00> : vector<16xf32>
    %71 = vector.multi_reduction <add>, %68, %cst_32 [1] : vector<16x64xf32> to vector<16xf32>
    %72 = vector.shape_cast %71 : vector<16xf32> to vector<16x1xf32>
    %73 = vector.extract_strided_slice %72 {offsets = [0, 0], sizes = [8, 1], strides = [1, 1]} : vector<16x1xf32> to vector<8x1xf32>
    %74 = vector.extract_strided_slice %72 {offsets = [8, 0], sizes = [8, 1], strides = [1, 1]} : vector<16x1xf32> to vector<8x1xf32>
    %75 = arith.addf %73, %74 : vector<8x1xf32>
    %cst_33 = arith.constant 1.280000e+02 : f32
    %76 = vector.broadcast %cst_33 : f32 to vector<8x1xf32>
    %77 = arith.divf %75, %76 : vector<8x1xf32>
    %78 = tpu.concatenate %77, %77 in 0 : vector<8x1xf32>, vector<8x1xf32> -> vector<16x1xf32>
    %79 = vector.broadcast %78 : vector<16x1xf32> to vector<16x64xf32>
    %80 = arith.subf %68, %79 : vector<16x64xf32>
    %81 = arith.mulf %80, %80 : vector<16x64xf32>
    %cst_34 = arith.constant dense<0.000000e+00> : vector<16xf32>
    %82 = vector.multi_reduction <add>, %81, %cst_34 [1] : vector<16x64xf32> to vector<16xf32>
    %83 = vector.shape_cast %82 : vector<16xf32> to vector<16x1xf32>
    %84 = vector.extract_strided_slice %83 {offsets = [0, 0], sizes = [8, 1], strides = [1, 1]} : vector<16x1xf32> to vector<8x1xf32>
    %85 = vector.extract_strided_slice %83 {offsets = [8, 0], sizes = [8, 1], strides = [1, 1]} : vector<16x1xf32> to vector<8x1xf32>
    %86 = arith.addf %84, %85 : vector<8x1xf32>
    %cst_35 = arith.constant 1.280000e+02 : f32
    %87 = vector.broadcast %cst_35 : f32 to vector<8x1xf32>
    %88 = arith.divf %86, %87 : vector<8x1xf32>
    %89 = tpu.concatenate %88, %88 in 0 : vector<8x1xf32>, vector<8x1xf32> -> vector<16x1xf32>
    %cst_36 = arith.constant 9.99999974E-6 : f32
    %90 = vector.broadcast %cst_36 : f32 to vector<16x1xf32>
    %91 = arith.addf %89, %90 : vector<16x1xf32>
    %92 = math.rsqrt %91 : vector<16x1xf32>
    %93 = vector.broadcast %92 : vector<16x1xf32> to vector<16x64xf32>
    %94 = arith.mulf %80, %93 : vector<16x64xf32>
    %95 = vector.broadcast %69 : vector<16x1xf32> to vector<16x64xf32>
    %96 = arith.mulf %94, %95 : vector<16x64xf32>
    %97 = vector.broadcast %70 : vector<16x1xf32> to vector<16x64xf32>
    %98 = arith.addf %96, %97 : vector<16x64xf32>
    %cst_37 = arith.constant 0.000000e+00 : f32
    %99 = vector.broadcast %cst_37 : f32 to vector<16x64xf32>
    %100 = arith.maximumf %98, %99 : vector<16x64xf32>
    %c0_38 = arith.constant 0 : index
    %c0_39 = arith.constant 0 : index
    %101 = vector.load %arg13[%c0_38, %c0_39] : memref<8x16xf32, #tpu.memory_space<vmem>>, vector<8x16xf32>
    %cst_40 = arith.constant dense<0.000000e+00> : vector<8x64xf32>
    %102 = tpu.matmul %101, %100, %cst_40 {dimension_numbers = #tpu.dot_dimension_numbers<[1], [0], [0], [1], [0, 0, 1, 1], [], []>} : vector<8x16xf32>, vector<16x64xf32>, vector<8x64xf32> -> vector<8x64xf32>
    %c0_41 = arith.constant 0 : index
    %c0_42 = arith.constant 0 : index
    %103 = vector.load %arg14[%c0_41, %c0_42] : memref<8x1xf32, #tpu.memory_space<vmem>>, vector<8x1xf32>
    %104 = vector.broadcast %103 : vector<8x1xf32> to vector<8x64xf32>
    %105 = arith.addf %102, %104 : vector<8x64xf32>
    %cst_43 = arith.constant dense<0.000000e+00> : vector<8x64xf32>
    %106 = tpu.matmul %105, %1, %cst_43 {dimension_numbers = #tpu.dot_dimension_numbers<[1], [0], [0], [1], [0, 0, 1, 1], [], []>} : vector<8x64xf32>, vector<64x64xf32>, vector<8x64xf32> -> vector<8x64xf32>
    %c0_44 = arith.constant 0 : index
    %c0_45 = arith.constant 0 : index
    %107 = vector.load %arg15[%c0_44, %c0_45] : memref<8x1xf32, #tpu.memory_space<vmem>>, vector<8x1xf32>
    %c0_46 = arith.constant 0 : index
    %c0_47 = arith.constant 0 : index
    %108 = vector.load %arg16[%c0_46, %c0_47] : memref<8x1xf32, #tpu.memory_space<vmem>>, vector<8x1xf32>
    %cst_48 = arith.constant dense<0.000000e+00> : vector<8xf32>
    %109 = vector.multi_reduction <add>, %106, %cst_48 [1] : vector<8x64xf32> to vector<8xf32>
    %110 = vector.shape_cast %109 : vector<8xf32> to vector<8x1xf32>
    %111 = vector.extract_strided_slice %110 {offsets = [0, 0], sizes = [4, 1], strides = [1, 1]} : vector<8x1xf32> to vector<4x1xf32>
    %112 = vector.extract_strided_slice %110 {offsets = [4, 0], sizes = [4, 1], strides = [1, 1]} : vector<8x1xf32> to vector<4x1xf32>
    %113 = arith.addf %111, %112 : vector<4x1xf32>
    %cst_49 = arith.constant 1.280000e+02 : f32
    %114 = vector.broadcast %cst_49 : f32 to vector<4x1xf32>
    %115 = arith.divf %113, %114 : vector<4x1xf32>
    %116 = tpu.concatenate %115, %115 in 0 : vector<4x1xf32>, vector<4x1xf32> -> vector<8x1xf32>
    %117 = vector.broadcast %116 : vector<8x1xf32> to vector<8x64xf32>
    %118 = arith.subf %106, %117 : vector<8x64xf32>
    %119 = arith.mulf %118, %118 : vector<8x64xf32>
    %cst_50 = arith.constant dense<0.000000e+00> : vector<8xf32>
    %120 = vector.multi_reduction <add>, %119, %cst_50 [1] : vector<8x64xf32> to vector<8xf32>
    %121 = vector.shape_cast %120 : vector<8xf32> to vector<8x1xf32>
    %122 = vector.extract_strided_slice %121 {offsets = [0, 0], sizes = [4, 1], strides = [1, 1]} : vector<8x1xf32> to vector<4x1xf32>
    %123 = vector.extract_strided_slice %121 {offsets = [4, 0], sizes = [4, 1], strides = [1, 1]} : vector<8x1xf32> to vector<4x1xf32>
    %124 = arith.addf %122, %123 : vector<4x1xf32>
    %cst_51 = arith.constant 1.280000e+02 : f32
    %125 = vector.broadcast %cst_51 : f32 to vector<4x1xf32>
    %126 = arith.divf %124, %125 : vector<4x1xf32>
    %127 = tpu.concatenate %126, %126 in 0 : vector<4x1xf32>, vector<4x1xf32> -> vector<8x1xf32>
    %cst_52 = arith.constant 9.99999974E-6 : f32
    %128 = vector.broadcast %cst_52 : f32 to vector<8x1xf32>
    %129 = arith.addf %127, %128 : vector<8x1xf32>
    %130 = math.rsqrt %129 : vector<8x1xf32>
    %131 = vector.broadcast %130 : vector<8x1xf32> to vector<8x64xf32>
    %132 = arith.mulf %118, %131 : vector<8x64xf32>
    %133 = vector.broadcast %107 : vector<8x1xf32> to vector<8x64xf32>
    %134 = arith.mulf %132, %133 : vector<8x64xf32>
    %135 = vector.broadcast %108 : vector<8x1xf32> to vector<8x64xf32>
    %136 = arith.addf %134, %135 : vector<8x64xf32>
    %cst_53 = arith.constant 0.000000e+00 : f32
    %137 = vector.broadcast %cst_53 : f32 to vector<8x64xf32>
    %138 = arith.maximumf %136, %137 : vector<8x64xf32>
    %cst_54 = arith.constant 0.000000e+00 : f32
    %139 = vector.broadcast %cst_54 : f32 to vector<8x16xf32>
    %140 = tpu.concatenate %139, %138, %139 in 1 : vector<8x16xf32>, vector<8x64xf32>, vector<8x16xf32> -> vector<8x96xf32>
    %141 = vector.extract_strided_slice %140 {offsets = [0, 0], sizes = [8, 64], strides = [1, 1]} : vector<8x96xf32> to vector<8x64xf32>
    %142 = vector.extract_strided_slice %140 {offsets = [0, 8], sizes = [8, 64], strides = [1, 1]} : vector<8x96xf32> to vector<8x64xf32>
    %143 = vector.extract_strided_slice %140 {offsets = [0, 16], sizes = [8, 64], strides = [1, 1]} : vector<8x96xf32> to vector<8x64xf32>
    %144 = vector.extract_strided_slice %140 {offsets = [0, 24], sizes = [8, 64], strides = [1, 1]} : vector<8x96xf32> to vector<8x64xf32>
    %145 = vector.extract_strided_slice %140 {offsets = [0, 32], sizes = [8, 64], strides = [1, 1]} : vector<8x96xf32> to vector<8x64xf32>
    %146 = tpu.concatenate %141, %142, %143, %144, %145 in 0 : vector<8x64xf32>, vector<8x64xf32>, vector<8x64xf32>, vector<8x64xf32>, vector<8x64xf32> -> vector<40x64xf32>
    %c0_55 = arith.constant 0 : index
    %c0_56 = arith.constant 0 : index
    %147 = vector.load %arg17[%c0_55, %c0_56] : memref<8x40xf32, #tpu.memory_space<vmem>>, vector<8x40xf32>
    %cst_57 = arith.constant dense<0.000000e+00> : vector<8x64xf32>
    %148 = tpu.matmul %147, %146, %cst_57 {dimension_numbers = #tpu.dot_dimension_numbers<[1], [0], [0], [1], [0, 0, 1, 1], [], []>} : vector<8x40xf32>, vector<40x64xf32>, vector<8x64xf32> -> vector<8x64xf32>
    %c0_58 = arith.constant 0 : index
    %c0_59 = arith.constant 0 : index
    %149 = vector.load %arg18[%c0_58, %c0_59] : memref<8x1xf32, #tpu.memory_space<vmem>>, vector<8x1xf32>
    %150 = vector.broadcast %149 : vector<8x1xf32> to vector<8x64xf32>
    %151 = arith.addf %148, %150 : vector<8x64xf32>
    %c0_60 = arith.constant 0 : index
    %c0_61 = arith.constant 0 : index
    %152 = vector.load %arg19[%c0_60, %c0_61] : memref<8x1xf32, #tpu.memory_space<vmem>>, vector<8x1xf32>
    %c0_62 = arith.constant 0 : index
    %c0_63 = arith.constant 0 : index
    %153 = vector.load %arg20[%c0_62, %c0_63] : memref<8x1xf32, #tpu.memory_space<vmem>>, vector<8x1xf32>
    %cst_64 = arith.constant dense<0.000000e+00> : vector<8xf32>
    %154 = vector.multi_reduction <add>, %151, %cst_64 [1] : vector<8x64xf32> to vector<8xf32>
    %155 = vector.shape_cast %154 : vector<8xf32> to vector<8x1xf32>
    %156 = vector.extract_strided_slice %155 {offsets = [0, 0], sizes = [4, 1], strides = [1, 1]} : vector<8x1xf32> to vector<4x1xf32>
    %157 = vector.extract_strided_slice %155 {offsets = [4, 0], sizes = [4, 1], strides = [1, 1]} : vector<8x1xf32> to vector<4x1xf32>
    %158 = arith.addf %156, %157 : vector<4x1xf32>
    %cst_65 = arith.constant 1.280000e+02 : f32
    %159 = vector.broadcast %cst_65 : f32 to vector<4x1xf32>
    %160 = arith.divf %158, %159 : vector<4x1xf32>
    %161 = tpu.concatenate %160, %160 in 0 : vector<4x1xf32>, vector<4x1xf32> -> vector<8x1xf32>
    %162 = vector.broadcast %161 : vector<8x1xf32> to vector<8x64xf32>
    %163 = arith.subf %151, %162 : vector<8x64xf32>
    %164 = arith.mulf %163, %163 : vector<8x64xf32>
    %cst_66 = arith.constant dense<0.000000e+00> : vector<8xf32>
    %165 = vector.multi_reduction <add>, %164, %cst_66 [1] : vector<8x64xf32> to vector<8xf32>
    %166 = vector.shape_cast %165 : vector<8xf32> to vector<8x1xf32>
    %167 = vector.extract_strided_slice %166 {offsets = [0, 0], sizes = [4, 1], strides = [1, 1]} : vector<8x1xf32> to vector<4x1xf32>
    %168 = vector.extract_strided_slice %166 {offsets = [4, 0], sizes = [4, 1], strides = [1, 1]} : vector<8x1xf32> to vector<4x1xf32>
    %169 = arith.addf %167, %168 : vector<4x1xf32>
    %cst_67 = arith.constant 1.280000e+02 : f32
    %170 = vector.broadcast %cst_67 : f32 to vector<4x1xf32>
    %171 = arith.divf %169, %170 : vector<4x1xf32>
    %172 = tpu.concatenate %171, %171 in 0 : vector<4x1xf32>, vector<4x1xf32> -> vector<8x1xf32>
    %cst_68 = arith.constant 9.99999974E-6 : f32
    %173 = vector.broadcast %cst_68 : f32 to vector<8x1xf32>
    %174 = arith.addf %172, %173 : vector<8x1xf32>
    %175 = math.rsqrt %174 : vector<8x1xf32>
    %176 = vector.broadcast %175 : vector<8x1xf32> to vector<8x64xf32>
    %177 = arith.mulf %163, %176 : vector<8x64xf32>
    %178 = vector.broadcast %152 : vector<8x1xf32> to vector<8x64xf32>
    %179 = arith.mulf %177, %178 : vector<8x64xf32>
    %180 = vector.broadcast %153 : vector<8x1xf32> to vector<8x64xf32>
    %181 = arith.addf %179, %180 : vector<8x64xf32>
    %cst_69 = arith.constant 0.000000e+00 : f32
    %182 = vector.broadcast %cst_69 : f32 to vector<8x64xf32>
    %183 = arith.maximumf %181, %182 : vector<8x64xf32>
    %184 = vector.extract_strided_slice %183 {offsets = [0, 0], sizes = [1, 64], strides = [1, 1]} : vector<8x64xf32> to vector<1x64xf32>
    %185 = vector.extract_strided_slice %183 {offsets = [2, 0], sizes = [1, 64], strides = [1, 1]} : vector<8x64xf32> to vector<1x64xf32>
    %186 = vector.extract_strided_slice %183 {offsets = [4, 0], sizes = [1, 64], strides = [1, 1]} : vector<8x64xf32> to vector<1x64xf32>
    %187 = vector.extract_strided_slice %183 {offsets = [6, 0], sizes = [1, 64], strides = [1, 1]} : vector<8x64xf32> to vector<1x64xf32>
    %188 = tpu.concatenate %184, %185, %186, %187 in 0 : vector<1x64xf32>, vector<1x64xf32>, vector<1x64xf32>, vector<1x64xf32> -> vector<4x64xf32>
    %189 = vector.extract_strided_slice %183 {offsets = [1, 0], sizes = [1, 64], strides = [1, 1]} : vector<8x64xf32> to vector<1x64xf32>
    %190 = vector.extract_strided_slice %183 {offsets = [3, 0], sizes = [1, 64], strides = [1, 1]} : vector<8x64xf32> to vector<1x64xf32>
    %191 = vector.extract_strided_slice %183 {offsets = [5, 0], sizes = [1, 64], strides = [1, 1]} : vector<8x64xf32> to vector<1x64xf32>
    %192 = vector.extract_strided_slice %183 {offsets = [7, 0], sizes = [1, 64], strides = [1, 1]} : vector<8x64xf32> to vector<1x64xf32>
    %193 = tpu.concatenate %189, %190, %191, %192 in 0 : vector<1x64xf32>, vector<1x64xf32>, vector<1x64xf32>, vector<1x64xf32> -> vector<4x64xf32>
    %cst_70 = arith.constant 2.000000e+00 : f32
    %194 = vector.broadcast %cst_70 : f32 to vector<4x64xf32>
    %195 = arith.addf %193, %194 : vector<4x64xf32>
    %cst_71 = arith.constant 0.000000e+00 : f32
    %196 = vector.broadcast %cst_71 : f32 to vector<4x64xf32>
    %197 = arith.subf %196, %195 : vector<4x64xf32>
    %198 = math.exp %197 : vector<4x64xf32>
    %cst_72 = arith.constant 1.000000e+00 : f32
    %199 = vector.broadcast %cst_72 : f32 to vector<4x64xf32>
    %200 = arith.addf %199, %198 : vector<4x64xf32>
    %cst_73 = arith.constant 1.000000e+00 : f32
    %201 = vector.broadcast %cst_73 : f32 to vector<4x64xf32>
    %202 = arith.divf %201, %200 : vector<4x64xf32>
    %cst_74 = arith.constant 9.99999997E-7 : f32
    %203 = vector.broadcast %cst_74 : f32 to vector<4x64xf32>
    %204 = arith.addf %202, %203 : vector<4x64xf32>
    %205 = arith.addf %17, %188 : vector<4x64xf32>
    %206 = arith.mulf %205, %204 : vector<4x64xf32>
    %207 = math.log %204 : vector<4x64xf32>
    %208 = vector.extract_strided_slice %12 {offsets = [0, 0], sizes = [2, 64], strides = [1, 1]} : vector<4x64xf32> to vector<2x64xf32>
    %209 = vector.extract_strided_slice %206 {offsets = [0, 0], sizes = [2, 64], strides = [1, 1]} : vector<4x64xf32> to vector<2x64xf32>
    %210 = tpu.concatenate %208, %209 in 0 : vector<2x64xf32>, vector<2x64xf32> -> vector<4x64xf32>
    %211 = vector.extract_strided_slice %12 {offsets = [2, 0], sizes = [2, 64], strides = [1, 1]} : vector<4x64xf32> to vector<2x64xf32>
    %212 = vector.extract_strided_slice %206 {offsets = [2, 0], sizes = [2, 64], strides = [1, 1]} : vector<4x64xf32> to vector<2x64xf32>
    %213 = tpu.concatenate %211, %212 in 0 : vector<2x64xf32>, vector<2x64xf32> -> vector<4x64xf32>
    %214 = tpu.concatenate %210, %213 in 0 : vector<4x64xf32>, vector<4x64xf32> -> vector<8x64xf32>
    %c0_75 = arith.constant 0 : index
    %c0_76 = arith.constant 0 : index
    %215 = vector.load %arg21[%c0_75, %c0_76] : memref<8x64xf32, #tpu.memory_space<vmem>>, vector<8x64xf32>
    tpu.vector_store %arg21[%c0_75, %c0_76], %214 {strides = array<i32>} : memref<8x64xf32, #tpu.memory_space<vmem>>, vector<8x64xf32>,
    %c0_77 = arith.constant 0 : index
    %c0_78 = arith.constant 0 : index
    %216 = vector.load %arg3[%c0_77, %c0_78] : memref<1x1xf32, #tpu.memory_space<vmem>>, vector<1x1xf32>
    %217 = vector.extract_strided_slice %207 {offsets = [0, 0], sizes = [2, 64], strides = [1, 1]} : vector<4x64xf32> to vector<2x64xf32>
    %cst_79 = arith.constant dense<0.000000e+00> : vector<2xf32>
    %218 = vector.multi_reduction <add>, %217, %cst_79 [1] : vector<2x64xf32> to vector<2xf32>
    %219 = vector.shape_cast %218 : vector<2xf32> to vector<2x1xf32>
    %cst_80 = arith.constant dense<0.000000e+00> : vector<1xf32>
    %220 = vector.multi_reduction <add>, %219, %cst_80 [0] : vector<2x1xf32> to vector<1xf32>
    %221 = vector.shape_cast %220 : vector<1xf32> to vector<1x1xf32>
    %222 = vector.extract_strided_slice %214 {offsets = [0, 0], sizes = [4, 64], strides = [1, 1]} : vector<8x64xf32> to vector<4x64xf32>
    %223 = arith.mulf %222, %222 : vector<4x64xf32>
    %cst_81 = arith.constant dense<0.000000e+00> : vector<4xf32>
    %224 = vector.multi_reduction <add>, %223, %cst_81 [1] : vector<4x64xf32> to vector<4xf32>
    %225 = vector.shape_cast %224 : vector<4xf32> to vector<4x1xf32>
    %cst_82 = arith.constant dense<0.000000e+00> : vector<1xf32>
    %226 = vector.multi_reduction <add>, %225, %cst_82 [0] : vector<4x1xf32> to vector<1xf32>
    %227 = vector.shape_cast %226 : vector<1xf32> to vector<1x1xf32>
    %228 = arith.addf %216, %221 : vector<1x1xf32>
    %cst_83 = arith.constant 470.496521 : f32
    %229 = vector.broadcast %cst_83 : f32 to vector<1x1xf32>
    %230 = arith.addf %227, %229 : vector<1x1xf32>
    %cst_84 = arith.constant 5.000000e-01 : f32
    %231 = vector.broadcast %cst_84 : f32 to vector<1x1xf32>
    %232 = arith.mulf %231, %230 : vector<1x1xf32>
    %233 = arith.subf %228, %232 : vector<1x1xf32>
    %cst_85 = arith.constant 0.000000e+00 : f32
    %234 = vector.broadcast %cst_85 : f32 to vector<1x1xf32>
    %235 = arith.subf %234, %233 : vector<1x1xf32>
    %cst_86 = arith.constant 177.445679 : f32
    %236 = vector.broadcast %cst_86 : f32 to vector<1x1xf32>
    %237 = arith.divf %235, %236 : vector<1x1xf32>
    %238 = vector.extract_strided_slice %207 {offsets = [2, 0], sizes = [2, 64], strides = [1, 1]} : vector<4x64xf32> to vector<2x64xf32>
    %cst_87 = arith.constant dense<0.000000e+00> : vector<2xf32>
    %239 = vector.multi_reduction <add>, %238, %cst_87 [1] : vector<2x64xf32> to vector<2xf32>
    %240 = vector.shape_cast %239 : vector<2xf32> to vector<2x1xf32>
    %cst_88 = arith.constant dense<0.000000e+00> : vector<1xf32>
    %241 = vector.multi_reduction <add>, %240, %cst_88 [0] : vector<2x1xf32> to vector<1xf32>
    %242 = vector.shape_cast %241 : vector<1xf32> to vector<1x1xf32>
    %243 = vector.extract_strided_slice %214 {offsets = [4, 0], sizes = [4, 64], strides = [1, 1]} : vector<8x64xf32> to vector<4x64xf32>
    %244 = arith.mulf %243, %243 : vector<4x64xf32>
    %cst_89 = arith.constant dense<0.000000e+00> : vector<4xf32>
    %245 = vector.multi_reduction <add>, %244, %cst_89 [1] : vector<4x64xf32> to vector<4xf32>
    %246 = vector.shape_cast %245 : vector<4xf32> to vector<4x1xf32>
    %cst_90 = arith.constant dense<0.000000e+00> : vector<1xf32>
    %247 = vector.multi_reduction <add>, %246, %cst_90 [0] : vector<4x1xf32> to vector<1xf32>
    %248 = vector.shape_cast %247 : vector<1xf32> to vector<1x1xf32>
    %249 = arith.addf %216, %242 : vector<1x1xf32>
    %cst_91 = arith.constant 470.496521 : f32
    %250 = vector.broadcast %cst_91 : f32 to vector<1x1xf32>
    %251 = arith.addf %248, %250 : vector<1x1xf32>
    %cst_92 = arith.constant 5.000000e-01 : f32
    %252 = vector.broadcast %cst_92 : f32 to vector<1x1xf32>
    %253 = arith.mulf %252, %251 : vector<1x1xf32>
    %254 = arith.subf %249, %253 : vector<1x1xf32>
    %cst_93 = arith.constant 0.000000e+00 : f32
    %255 = vector.broadcast %cst_93 : f32 to vector<1x1xf32>
    %256 = arith.subf %255, %254 : vector<1x1xf32>
    %cst_94 = arith.constant 177.445679 : f32
    %257 = vector.broadcast %cst_94 : f32 to vector<1x1xf32>
    %258 = arith.divf %256, %257 : vector<1x1xf32>
    %259 = tpu.concatenate %237, %258 in 0 : vector<1x1xf32>, vector<1x1xf32> -> vector<2x1xf32>
    %c0_95 = arith.constant 0 : index
    %c0_96 = arith.constant 0 : index
    %260 = vector.load %arg22[%c0_95, %c0_96] : memref<2x1xf32, #tpu.memory_space<vmem>>, vector<2x1xf32>
    tpu.vector_store %arg22[%c0_95, %c0_96], %259 {strides = array<i32>} : memref<2x1xf32, #tpu.memory_space<vmem>>, vector<2x1xf32>,
    return
  }
}

</mosaic_0001>

<llo_original>
// kernel: tile.0
$region0: #{tile.0}
  %s0 = inlined_call_operand.vmem [shape: f32[2,4], index: 0, kind: input, shape index: {}]
  %s1 = inlined_call_operand.vmem [shape: f32[8,1], index: 1, kind: output, shape index: {}]
  $region1: #{tile.0} parent=0
    #allocation0 [shape = 'u8[4096]{0}', space=vmem, size = 0x1000, scoped, tag = 'scoped mem for input reshape']
    %s3 = ssub.s32 4, 1
    %v4 = vld [vmem:[%s0] sm:%s3]
    %5 = vst [vmem:[#allocation0] sm:%s3] %v4
    %v6 = vld [vmem:[#allocation0] sm:$0x3]
    %vm7 = vcmask 7168
    %8 = vst.msk [vmem:[%s1] ss:$4 sm:$0x3] %vm7, %v6
    %v9 = vld [vmem:[#allocation0] sm:$0x3]
    %10 = vrot.lane.b32.xlu0 %v9, 127
    %v11 = vpop.permute.xlu0 %10
    %vm12 = vcmask 7168
    %s13 = scalar_lea.vmem %s1, 1
    %14 = vst.msk [vmem:[%s13] ss:$4 sm:$0x3] %vm12, %v11
    %v15 = vld [vmem:[#allocation0] sm:$0x3]
    %16 = vrot.lane.b32.xlu0 %v15, 126
    %v17 = vpop.permute.xlu0 %16
    %vm18 = vcmask 7168
    %s19 = scalar_lea.vmem %s1, 2
    %20 = vst.msk [vmem:[%s19] ss:$4 sm:$0x3] %vm18, %v17
    %v21 = vld [vmem:[#allocation0] sm:$0x3]
    %22 = vrot.lane.b32.xlu0 %v21, 125
    %v23 = vpop.permute.xlu0 %22
    %vm24 = vcmask 7168
    %s25 = scalar_lea.vmem %s1, 3
    %26 = vst.msk [vmem:[%s25] ss:$4 sm:$0x3] %vm24, %v23

// kernel: tile.133
$region0: #{tile.133}
  #allocation0 [shape = 's32[1]{0}', space=sflag, size = 0x4, scoped, tag = 'scoped memory for tile.133']
  %s0 = inlined_call_operand.vmem [shape: f32[4], index: 0, kind: input, shape index: {}]
  %s1 = inlined_call_operand.vmem [shape: f32[2,4], index: 1, kind: output, shape index: {}]
  // Predicated region
  $region2: #{tile.133} parent=0 // pred_check
    _
  $region3: #{tile.133} parent=0 // pred_check_branch
    %3 = sbr.rel (0) target = $region5
  $region4: #{tile.133} parent=0 // pred_region
    _
  $region5: #{tile.133} parent=0 // pred_fallthru
    _
  %v4 = vld [vmem:[%s0] ss:$0 sm:$0xff]
  %5 = vst [vmem:[%s1] sm:$0x3] %v4

// kernel: tile.73
$region0: #{tile.73}
  #allocation0 [shape = 's32[1]{0}', space=sflag, size = 0x4, scoped, tag = 'scoped memory for tile.73']
  %s0 = inlined_call_operand.vmem [shape: f32[8], index: 0, kind: input, shape index: {}]
  %s1 = inlined_call_operand.vmem [shape: f32[2,8], index: 1, kind: output, shape index: {}]
  // Predicated region
  $region2: #{tile.73} parent=0 // pred_check
    _
  $region3: #{tile.73} parent=0 // pred_check_branch
    %3 = sbr.rel (0) target = $region5
  $region4: #{tile.73} parent=0 // pred_region
    _
  $region5: #{tile.73} parent=0 // pred_fallthru
    _
  %v4 = vld [vmem:[%s0] ss:$0 sm:$0xff]
  %5 = vst [vmem:[%s1] sm:$0x3] %v4

// kernel: tile.2
$region0: #{tile.2}
  %s0 = inlined_call_operand.vmem [shape: f32[2,8], index: 0, kind: input, shape index: {}]
  %s1 = inlined_call_operand.vmem [shape: f32[16,1], index: 1, kind: output, shape index: {}]
  $region1: #{tile.2} parent=0
    #allocation0 [shape = 'u8[4096]{0}', space=vmem, size = 0x1000, scoped, tag = 'scoped mem for input reshape']
    %s3 = ssub.s32 4, 1
    %v4 = vld [vmem:[%s0] sm:%s3]
    %5 = vst [vmem:[#allocation0] sm:%s3] %v4
    %v6 = vld [vmem:[#allocation0] sm:$0x3]
    %vm7 = vcmask 7168
    %8 = vst.msk [vmem:[%s1] ss:$8 sm:$0x3] %vm7, %v6
    %v9 = vld [vmem:[#allocation0] sm:$0x3]
    %10 = vrot.lane.b32.xlu0 %v9, 127
    %v11 = vpop.permute.xlu0 %10
    %vm12 = vcmask 7168
    %s13 = scalar_lea.vmem %s1, 1
    %14 = vst.msk [vmem:[%s13] ss:$8 sm:$0x3] %vm12, %v11
    %v15 = vld [vmem:[#allocation0] sm:$0x3]
    %16 = vrot.lane.b32.xlu0 %v15, 126
    %v17 = vpop.permute.xlu0 %16
    %vm18 = vcmask 7168
    %s19 = scalar_lea.vmem %s1, 2
    %20 = vst.msk [vmem:[%s19] ss:$8 sm:$0x3] %vm18, %v17
    %v21 = vld [vmem:[#allocation0] sm:$0x3]
    %22 = vrot.lane.b32.xlu0 %v21, 125
    %v23 = vpop.permute.xlu0 %22
    %vm24 = vcmask 7168
    %s25 = scalar_lea.vmem %s1, 3
    %26 = vst.msk [vmem:[%s25] ss:$8 sm:$0x3] %vm24, %v23
    %v27 = vld [vmem:[#allocation0] sm:$0x3]
    %28 = vrot.lane.b32.xlu0 %v27, 124
    %v29 = vpop.permute.xlu0 %28
    %vm30 = vcmask 7168
    %s31 = scalar_lea.vmem %s1, 4
    %32 = vst.msk [vmem:[%s31] ss:$8 sm:$0x3] %vm30, %v29
    %v33 = vld [vmem:[#allocation0] sm:$0x3]
    %34 = vrot.lane.b32.xlu0 %v33, 123
    %v35 = vpop.permute.xlu0 %34
    %vm36 = vcmask 7168
    %s37 = scalar_lea.vmem %s1, 5
    %38 = vst.msk [vmem:[%s37] ss:$8 sm:$0x3] %vm36, %v35
    %v39 = vld [vmem:[#allocation0] sm:$0x3]
    %40 = vrot.lane.b32.xlu0 %v39, 122
    %v41 = vpop.permute.xlu0 %40
    %vm42 = vcmask 7168
    %s43 = scalar_lea.vmem %s1, 6
    %44 = vst.msk [vmem:[%s43] ss:$8 sm:$0x3] %vm42, %v41
    %v45 = vld [vmem:[#allocation0] sm:$0x3]
    %46 = vrot.lane.b32.xlu0 %v45, 121
    %v47 = vpop.permute.xlu0 %46
    %vm48 = vcmask 7168
    %s49 = scalar_lea.vmem %s1, 7
    %50 = vst.msk [vmem:[%s49] ss:$8 sm:$0x3] %vm48, %v47

// kernel: dcbf_normal_flow.1
$region0: #{dcbf_normal_flow.1}
  #allocation0 [shape = 'u32[]', space=smem, size = 0x4, offset = 0x4, fixed_abs, tag = 'smem constant byte address 0x4 - core index']
  #allocation1 [shape = 'u32[72,128]{1,0:T(1,128)}', space=vmem, size = 0x9000, scoped, tag = 'internal scratch']
  #allocation2 [shape = 'f32[1,1]{1,0:T(1,128)S(1)}', space=vmem, size = 0x200, scoped, tag = 'scoped memory for dcbf_normal_flow.1']
  %s0 = inlined_call_operand.vmem [shape: f32[8,64], index: 0, kind: input, shape index: {}]
  %s1 = inlined_call_operand.vmem [shape: f32[8,1], index: 1, kind: input, shape index: {}]
  %s2 = inlined_call_operand.vmem [shape: f32[8,1], index: 2, kind: input, shape index: {}]
  %s3 = inlined_call_operand.<no memory space> [shape: f32[1,1], index: 3, kind: input, shape index: {}]
  %s4 = inlined_call_operand.vmem [shape: f32[64,64], index: 4, kind: input, shape index: {}]
  %s5 = inlined_call_operand.vmem [shape: f32[16,4], index: 5, kind: input, shape index: {}]
  %s6 = inlined_call_operand.vmem [shape: f32[16,1], index: 6, kind: input, shape index: {}]
  %s7 = inlined_call_operand.vmem [shape: f32[16,1], index: 7, kind: input, shape index: {}]
  %s8 = inlined_call_operand.vmem [shape: f32[16,1], index: 8, kind: input, shape index: {}]
  %s9 = inlined_call_operand.vmem [shape: f32[16,80], index: 9, kind: input, shape index: {}]
  %s10 = inlined_call_operand.vmem [shape: f32[16,1], index: 10, kind: input, shape index: {}]
  %s11 = inlined_call_operand.vmem [shape: f32[16,1], index: 11, kind: input, shape index: {}]
  %s12 = inlined_call_operand.vmem [shape: f32[16,1], index: 12, kind: input, shape index: {}]
  %s13 = inlined_call_operand.vmem [shape: f32[8,16], index: 13, kind: input, shape index: {}]
  %s14 = inlined_call_operand.vmem [shape: f32[8,1], index: 14, kind: input, shape index: {}]
  %s15 = inlined_call_operand.vmem [shape: f32[8,1], index: 15, kind: input, shape index: {}]
  %s16 = inlined_call_operand.vmem [shape: f32[8,1], index: 16, kind: input, shape index: {}]
  %s17 = inlined_call_operand.vmem [shape: f32[8,40], index: 17, kind: input, shape index: {}]
  %s18 = inlined_call_operand.vmem [shape: f32[8,1], index: 18, kind: input, shape index: {}]
  %s19 = inlined_call_operand.vmem [shape: f32[8,1], index: 19, kind: input, shape index: {}]
  %s20 = inlined_call_operand.vmem [shape: f32[8,1], index: 20, kind: input, shape index: {}]
  %s21 = inlined_call_operand.vmem [shape: f32[8,64], index: 21, kind: output, shape index: {0}]
  %s22 = inlined_call_operand.vmem [shape: f32[2,1], index: 22, kind: output, shape index: {1}]
  %23 = xla_tuple %s21, %s22
  %s24 = sld [smem:[#allocation0]]
  $region102: #{dcbf_normal_flow.1} parent=0
    _
  %s26 = ssub.s32 1, %s24
  %s27 = scalar_select 0, %s26, %s24
  %v28 = vstv %s3
  %29 = vst [vmem:[#allocation2] sm:$0x1] %v28
  // Predicated region
  $region2: #{dcbf_normal_flow.1} parent=0 // pred_check
    _
  $region3: #{dcbf_normal_flow.1} parent=0 // pred_check_branch
    %31 = sbr.rel (0) target = $region5
  $region4: #{dcbf_normal_flow.1} parent=0 // pred_region
    _
  $region5: #{dcbf_normal_flow.1} parent=0 // pred_fallthru
    _
  // Predicated region
  $region6: #{dcbf_normal_flow.1} parent=0 // pred_check
    _
  $region7: #{dcbf_normal_flow.1} parent=0 // pred_check_branch
    %33 = sbr.rel (0) target = $region9
  $region8: #{dcbf_normal_flow.1} parent=0 // pred_region
    _
  $region9: #{dcbf_normal_flow.1} parent=0 // pred_fallthru
    _
  // Predicated region
  $region10: #{dcbf_normal_flow.1} parent=0 // pred_check
    _
  $region11: #{dcbf_normal_flow.1} parent=0 // pred_check_branch
    %35 = sbr.rel (0) target = $region13
  $region12: #{dcbf_normal_flow.1} parent=0 // pred_region
    _
  $region13: #{dcbf_normal_flow.1} parent=0 // pred_fallthru
    _
  // Predicated region
  $region14: #{dcbf_normal_flow.1} parent=0 // pred_check
    _
  $region15: #{dcbf_normal_flow.1} parent=0 // pred_check_branch
    %37 = sbr.rel (0) target = $region17
  $region16: #{dcbf_normal_flow.1} parent=0 // pred_region
    _
  $region17: #{dcbf_normal_flow.1} parent=0 // pred_fallthru
    _
  // Predicated region
  $region18: #{dcbf_normal_flow.1} parent=0 // pred_check
    _
  $region19: #{dcbf_normal_flow.1} parent=0 // pred_check_branch
    %39 = sbr.rel (0) target = $region21
  $region20: #{dcbf_normal_flow.1} parent=0 // pred_region
    _
  $region21: #{dcbf_normal_flow.1} parent=0 // pred_fallthru
    _
  // Predicated region
  $region22: #{dcbf_normal_flow.1} parent=0 // pred_check
    _
  $region23: #{dcbf_normal_flow.1} parent=0 // pred_check_branch
    %41 = sbr.rel (0) target = $region25
  $region24: #{dcbf_normal_flow.1} parent=0 // pred_region
    _
  $region25: #{dcbf_normal_flow.1} parent=0 // pred_fallthru
    _
  // Predicated region
  $region26: #{dcbf_normal_flow.1} parent=0 // pred_check
    _
  $region27: #{dcbf_normal_flow.1} parent=0 // pred_check_branch
    %43 = sbr.rel (0) target = $region29
  $region28: #{dcbf_normal_flow.1} parent=0 // pred_region
    _
  $region29: #{dcbf_normal_flow.1} parent=0 // pred_fallthru
    _
  // Predicated region
  $region30: #{dcbf_normal_flow.1} parent=0 // pred_check
    _
  $region31: #{dcbf_normal_flow.1} parent=0 // pred_check_branch
    %45 = sbr.rel (0) target = $region33
  $region32: #{dcbf_normal_flow.1} parent=0 // pred_region
    _
  $region33: #{dcbf_normal_flow.1} parent=0 // pred_fallthru
    _
  // Predicated region
  $region34: #{dcbf_normal_flow.1} parent=0 // pred_check
    _
  $region35: #{dcbf_normal_flow.1} parent=0 // pred_check_branch
    %47 = sbr.rel (0) target = $region37
  $region36: #{dcbf_normal_flow.1} parent=0 // pred_region
    _
  $region37: #{dcbf_normal_flow.1} parent=0 // pred_fallthru
    _
  // Predicated region
  $region38: #{dcbf_normal_flow.1} parent=0 // pred_check
    _
  $region39: #{dcbf_normal_flow.1} parent=0 // pred_check_branch
    %49 = sbr.rel (0) target = $region41
  $region40: #{dcbf_normal_flow.1} parent=0 // pred_region
    _
  $region41: #{dcbf_normal_flow.1} parent=0 // pred_fallthru
    _
  // Predicated region
  $region42: #{dcbf_normal_flow.1} parent=0 // pred_check
    _
  $region43: #{dcbf_normal_flow.1} parent=0 // pred_check_branch
    %51 = sbr.rel (0) target = $region45
  $region44: #{dcbf_normal_flow.1} parent=0 // pred_region
    _
  $region45: #{dcbf_normal_flow.1} parent=0 // pred_fallthru
    _
  // Predicated region
  $region46: #{dcbf_normal_flow.1} parent=0 // pred_check
    _
  $region47: #{dcbf_normal_flow.1} parent=0 // pred_check_branch
    %53 = sbr.rel (0) target = $region49
  $region48: #{dcbf_normal_flow.1} parent=0 // pred_region
    _
  $region49: #{dcbf_normal_flow.1} parent=0 // pred_fallthru
    _
  // Predicated region
  $region50: #{dcbf_normal_flow.1} parent=0 // pred_check
    _
  $region51: #{dcbf_normal_flow.1} parent=0 // pred_check_branch
    %55 = sbr.rel (0) target = $region53
  $region52: #{dcbf_normal_flow.1} parent=0 // pred_region
    _
  $region53: #{dcbf_normal_flow.1} parent=0 // pred_fallthru
    _
  // Predicated region
  $region54: #{dcbf_normal_flow.1} parent=0 // pred_check
    _
  $region55: #{dcbf_normal_flow.1} parent=0 // pred_check_branch
    %57 = sbr.rel (0) target = $region57
  $region56: #{dcbf_normal_flow.1} parent=0 // pred_region
    _
  $region57: #{dcbf_normal_flow.1} parent=0 // pred_fallthru
    _
  // Predicated region
  $region58: #{dcbf_normal_flow.1} parent=0 // pred_check
    _
  $region59: #{dcbf_normal_flow.1} parent=0 // pred_check_branch
    %59 = sbr.rel (0) target = $region61
  $region60: #{dcbf_normal_flow.1} parent=0 // pred_region
    _
  $region61: #{dcbf_normal_flow.1} parent=0 // pred_fallthru
    _
  // Predicated region
  $region62: #{dcbf_normal_flow.1} parent=0 // pred_check
    _
  $region63: #{dcbf_normal_flow.1} parent=0 // pred_check_branch
    %61 = sbr.rel (0) target = $region65
  $region64: #{dcbf_normal_flow.1} parent=0 // pred_region
    _
  $region65: #{dcbf_normal_flow.1} parent=0 // pred_fallthru
    _
  // Predicated region
  $region66: #{dcbf_normal_flow.1} parent=0 // pred_check
    _
  $region67: #{dcbf_normal_flow.1} parent=0 // pred_check_branch
    %63 = sbr.rel (0) target = $region69
  $region68: #{dcbf_normal_flow.1} parent=0 // pred_region
    _
  $region69: #{dcbf_normal_flow.1} parent=0 // pred_fallthru
    _
  // Predicated region
  $region70: #{dcbf_normal_flow.1} parent=0 // pred_check
    _
  $region71: #{dcbf_normal_flow.1} parent=0 // pred_check_branch
    %65 = sbr.rel (0) target = $region73
  $region72: #{dcbf_normal_flow.1} parent=0 // pred_region
    _
  $region73: #{dcbf_normal_flow.1} parent=0 // pred_fallthru
    _
  // Predicated region
  $region74: #{dcbf_normal_flow.1} parent=0 // pred_check
    _
  $region75: #{dcbf_normal_flow.1} parent=0 // pred_check_branch
    %67 = sbr.rel (0) target = $region77
  $region76: #{dcbf_normal_flow.1} parent=0 // pred_region
    _
  $region77: #{dcbf_normal_flow.1} parent=0 // pred_fallthru
    _
  // Predicated region
  $region78: #{dcbf_normal_flow.1} parent=0 // pred_check
    _
  $region79: #{dcbf_normal_flow.1} parent=0 // pred_check_branch
    %69 = sbr.rel (0) target = $region81
  $region80: #{dcbf_normal_flow.1} parent=0 // pred_region
    _
  $region81: #{dcbf_normal_flow.1} parent=0 // pred_fallthru
    _
  // Predicated region
  $region82: #{dcbf_normal_flow.1} parent=0 // pred_check
    _
  $region83: #{dcbf_normal_flow.1} parent=0 // pred_check_branch
    %71 = sbr.rel (0) target = $region85
  $region84: #{dcbf_normal_flow.1} parent=0 // pred_region
    _
  $region85: #{dcbf_normal_flow.1} parent=0 // pred_fallthru
    _
  %v72 = vld [vmem:[%s0] sm:$0xff]
  %v73 = vld [vmem:[%s4] sm:$0xff]
  %v74 = vld [vmem:[%s4 + $0x8] sm:$0xff]
  %v75 = vld [vmem:[%s4 + $0x10] sm:$0xff]
  %v76 = vld [vmem:[%s4 + $0x18] sm:$0xff]
  %v77 = vld [vmem:[%s4 + $0x20] sm:$0xff]
  %v78 = vld [vmem:[%s4 + $0x28] sm:$0xff]
  %v79 = vld [vmem:[%s4 + $0x30] sm:$0xff]
  %v80 = vld [vmem:[%s4 + $0x38] sm:$0xff]
  %v81 = vld [vmem:[%s1] sm:$0xff]
  %83 = vset.pattern.permute.xlu0 0
  %84 = vperm.xlu0 %83, %v81
  %v85 = vpop.permute.xlu0 %84
  %v87 = vadd.f32 %v72, %v85
  %v88 = vld [vmem:[%s2] sm:$0xff]
  %90 = vset.pattern.permute.xlu0 0
  %91 = vperm.xlu0 %90, %v88
  %v92 = vpop.permute.xlu0 %91
  %v94 = vmul.f32 %v87, %v92
  %v96 = vrot.slane %v94, 3
  %v98 = vrot.slane %v94, 1
  %v100 = vrot.slane %v94, 5
  %vm102 = vcmask 1040384
  %v103 = vsel %vm102, %v96, %v98
  %vm104 = vcmask 1041408
  %v105 = vsel %vm104, %v103, %v100
  %vm106 = vcmask 1042432
  %v107 = vsel %vm106, %v105, %v96
  %v108 = vrot.slane %v94, 7
  %v110 = vsel %vm102, %v98, %v108
  %v111 = vsel %vm104, %v110, %v96
  %v112 = vsel %vm106, %v111, %v98
  %v113 = vld [vmem:[%s5] sm:$0xff]
  %v114 = vld [vmem:[%s5 + $0x8] sm:$0xff]
  %v115 = vld [vmem:[%s6] sm:$0xff]
  %v116 = vld [vmem:[%s6 + $0x8] sm:$0xff]
  %118 = vset.pattern.permute.xlu0 0
  %119 = vperm.xlu0 %118, %v115
  %v120 = vpop.permute.xlu0 %119
  %123 = vset.pattern.permute.xlu0 0
  %124 = vperm.xlu0 %123, %v116
  %v125 = vpop.permute.xlu0 %124
  %vm127 = vcmask 31744
  %v129 = vsel %vm127, %v113, 0
  %v132 = vsel %vm127, %v114, 0
  %vm134 = vcmask 1043456
  %v136 = vsel %vm134, %v107, 0
  %138 = vmatpush.msra.mxu0 0.0
  %139 = vmatpush.msra.mxu0 0.0
  %140 = vmatpush.msra.mxu0 0.0
  %141 = vmatpush.msra.mxu0 0.0
  %142 = vmatpush.msra.mxu0 0.0
  %143 = vmatpush.msra.mxu0 0.0
  %144 = vmatpush.msra.mxu0 0.0
  %145 = vmatpush.msra.mxu0 0.0
  %146 = vmatpush.msra.mxu0 0.0
  %147 = vmatpush.msra.mxu0 0.0
  %148 = vmatpush.msra.mxu0 0.0
  %149 = vmatpush.msra.mxu0 0.0
  %150 = vmatpush.msra.mxu0 0.0
  %151 = vmatpush.msra.mxu0 0.0
  %152 = vmatpush.msra.mxu0 0.0
  %153 = vmatpush.msra.mxu0 %v136
  %154 = vmatmul.f32.gmra.mxu0 %v129
  %v155 = vpop.f32.mrf.mxu0
  %v156 = vadd.f32 %v120, %v155
  %157 = vmatmul.f32.gmra.mxu0 %v132
  %v158 = vpop.f32.mrf.mxu0
  %v159 = vadd.f32 %v125, %v158
  %160 = vdwg.mxu0
  %vm161 = vcmask 523264
  %v163 = vsel %vm161, %v156, 0
  %v166 = vsel %vm161, %v159, 0
  %168 = vmatpush.msra.mxu0 0.0
  %169 = vmatpush.msra.mxu0 0.0
  %170 = vmatpush.msra.mxu0 0.0
  %171 = vmatpush.msra.mxu0 0.0
  %172 = vmatpush.msra.mxu0 0.0
  %173 = vmatpush.msra.mxu0 0.0
  %174 = vmatpush.msra.mxu0 0.0
  %175 = vmatpush.msra.mxu0 0.0
  %176 = vmatpush.msra.mxu0 %v80
  %177 = vmatpush.msra.mxu0 %v79
  %178 = vmatpush.msra.mxu0 %v78
  %179 = vmatpush.msra.mxu0 %v77
  %180 = vmatpush.msra.mxu0 %v76
  %181 = vmatpush.msra.mxu0 %v75
  %182 = vmatpush.msra.mxu0 %v74
  %183 = vmatpush.msra.mxu0 %v73
  %184 = vmatmul.f32.gmra.mxu0 %v163
  %v185 = vpop.f32.mrf.mxu0
  %v186 = vadd.f32 0.0, %v185
  %187 = vmatmul.f32.gmra.mxu0 %v166
  %v188 = vpop.f32.mrf.mxu0
  %v189 = vadd.f32 0.0, %v188
  %190 = vdwg.mxu0
  %v191 = vld [vmem:[%s7] sm:$0xff]
  %v192 = vld [vmem:[%s7 + $0x8] sm:$0xff]
  %v193 = vld [vmem:[%s8] sm:$0xff]
  %v194 = vld [vmem:[%s8 + $0x8] sm:$0xff]
  %v195 = vsel %vm161, %v186, 0.0
  %196 = vadd.xlane.f32.xlu0 %v195
  %v197 = vpop.xlane.xlu0 %196
  %v198 = vsel %vm161, %v189, 0.0
  %199 = vadd.xlane.f32.xlu0 %v198
  %v200 = vpop.xlane.xlu0 %199
  %v201 = vadd.f32 %v197, %v200
  %v202 = vrcp.pop 128.0
  %v203 = vmul.f32 128.0, %v202
  %v204 = vsub.f32 1.0, %v203
  %v205 = vmul.f32 %v202, %v204
  %v206 = vadd.f32 %v202, %v205
  %vm207 = vweird.f32 %v202
  %v208 = vsel %vm207, %v202, %v206
  %v209 = vmul.f32 %v201, %v208
  %211 = vset.pattern.permute.xlu0 0
  %212 = vperm.xlu0 %211, %v209
  %v213 = vpop.permute.xlu0 %212
  %v215 = vsub.f32 %v186, %v213
  %v216 = vsub.f32 %v189, %v213
  %v217 = vmul.f32 %v215, %v215
  %v218 = vmul.f32 %v216, %v216
  %v219 = vsel %vm161, %v217, 0.0
  %220 = vadd.xlane.f32.xlu0 %v219
  %v221 = vpop.xlane.xlu0 %220
  %v222 = vsel %vm161, %v218, 0.0
  %223 = vadd.xlane.f32.xlu0 %v222
  %v224 = vpop.xlane.xlu0 %223
  %v225 = vadd.f32 %v221, %v224
  %v226 = vmul.f32 %v225, %v208
  %v227 = vadd.f32 %v226, 1e-05
  %v228 = vrsqrt.pop %v227
  %v229 = vmul.f32 %v228, %v227
  %v230 = vmul.f32 %v229, %v228
  %v231 = vmul.f32 0.5, %v230
  %v232 = vsub.f32 1.5, %v231
  %v233 = vmul.f32 %v228, %v232
  %vm234 = vweird.f32 %v227
  %vm235 = vweird.f32 %v228
  %vm236 = vmor %vm234, %vm235
  %v237 = vsel %vm236, %v228, %v233
  %239 = vset.pattern.permute.xlu0 0
  %240 = vperm.xlu0 %239, %v237
  %v241 = vpop.permute.xlu0 %240
  %v243 = vmul.f32 %v215, %v241
  %v244 = vmul.f32 %v216, %v241
  %246 = vset.pattern.permute.xlu0 0
  %247 = vperm.xlu0 %246, %v191
  %v248 = vpop.permute.xlu0 %247
  %251 = vset.pattern.permute.xlu0 0
  %252 = vperm.xlu0 %251, %v192
  %v253 = vpop.permute.xlu0 %252
  %v255 = vmul.f32 %v243, %v248
  %v256 = vmul.f32 %v244, %v253
  %258 = vset.pattern.permute.xlu0 0
  %259 = vperm.xlu0 %258, %v193
  %v260 = vpop.permute.xlu0 %259
  %263 = vset.pattern.permute.xlu0 0
  %264 = vperm.xlu0 %263, %v194
  %v265 = vpop.permute.xlu0 %264
  %v267 = vadd.f32 %v255, %v260
  %v268 = vadd.f32 %v256, %v265
  %v269 = vmax.f32 %v267, 0.0
  %v270 = vmax.f32 %v268, 0.0
  %273 = vrot.lane.b32.xlu0 %v269, 16
  %v274 = vpop.permute.xlu0 %273
  %275 = vrot.lane.b32.xlu0 %v270, 16
  %v276 = vpop.permute.xlu0 %275
  %vm279 = vcmask 130048
  %v280 = vsel %vm279, 0.0, %v274
  %v281 = vsel %vm279, 0.0, %v276
  %vm282 = vcmask 654336
  %v283 = vsel %vm282, %v280, 0.0
  %v284 = vsel %vm282, %v281, 0.0
  %287 = vrot.lane.b32.xlu0 %v283, 120
  %v288 = vpop.permute.xlu0 %287
  %289 = vrot.lane.b32.xlu0 %v284, 120
  %v290 = vpop.permute.xlu0 %289
  %293 = vrot.lane.b32.xlu0 %v283, 112
  %v294 = vpop.permute.xlu0 %293
  %295 = vrot.lane.b32.xlu0 %v284, 112
  %v296 = vpop.permute.xlu0 %295
  %299 = vrot.lane.b32.xlu0 %v283, 104
  %v300 = vpop.permute.xlu0 %299
  %301 = vrot.lane.b32.xlu0 %v284, 104
  %v302 = vpop.permute.xlu0 %301
  %305 = vrot.lane.b32.xlu0 %v283, 96
  %v306 = vpop.permute.xlu0 %305
  %307 = vrot.lane.b32.xlu0 %v284, 96
  %v308 = vpop.permute.xlu0 %307
  %v311 = vld [vmem:[%s9] sm:$0xff]
  %v312 = vld [vmem:[%s9 + $0x8] sm:$0xff]
  %v313 = vld [vmem:[%s10] sm:$0xff]
  %v314 = vld [vmem:[%s10 + $0x8] sm:$0xff]
  %316 = vset.pattern.permute.xlu0 0
  %317 = vperm.xlu0 %316, %v313
  %v318 = vpop.permute.xlu0 %317
  %321 = vset.pattern.permute.xlu0 0
  %322 = vperm.xlu0 %321, %v314
  %v323 = vpop.permute.xlu0 %322
  %v326 = vsel %vm282, %v311, 0
  %v329 = vsel %vm282, %v312, 0
  %331 = vmatpush.msra.mxu0 0.0
  %332 = vmatpush.msra.mxu0 0.0
  %333 = vmatpush.msra.mxu0 0.0
  %334 = vmatpush.msra.mxu0 0.0
  %335 = vmatpush.msra.mxu0 0.0
  %336 = vmatpush.msra.mxu0 0.0
  %337 = vmatpush.msra.mxu0 %v308
  %338 = vmatpush.msra.mxu0 %v306
  %339 = vmatpush.msra.mxu0 %v302
  %340 = vmatpush.msra.mxu0 %v300
  %341 = vmatpush.msra.mxu0 %v296
  %342 = vmatpush.msra.mxu0 %v294
  %343 = vmatpush.msra.mxu0 %v290
  %344 = vmatpush.msra.mxu0 %v288
  %345 = vmatpush.msra.mxu0 %v284
  %346 = vmatpush.msra.mxu0 %v283
  %347 = vmatmul.f32.gmra.mxu0 %v326
  %v348 = vpop.f32.mrf.mxu0
  %v349 = vadd.f32 %v318, %v348
  %350 = vmatmul.f32.gmra.mxu0 %v329
  %v351 = vpop.f32.mrf.mxu0
  %v352 = vadd.f32 %v323, %v351
  %353 = vdwg.mxu0
  %v354 = vld [vmem:[%s11] sm:$0xff]
  %v355 = vld [vmem:[%s11 + $0x8] sm:$0xff]
  %v356 = vld [vmem:[%s12] sm:$0xff]
  %v357 = vld [vmem:[%s12 + $0x8] sm:$0xff]
  %v358 = vsel %vm161, %v349, 0.0
  %359 = vadd.xlane.f32.xlu0 %v358
  %v360 = vpop.xlane.xlu0 %359
  %v361 = vsel %vm161, %v352, 0.0
  %362 = vadd.xlane.f32.xlu0 %v361
  %v363 = vpop.xlane.xlu0 %362
  %v364 = vadd.f32 %v360, %v363
  %v365 = vmul.f32 %v364, %v208
  %367 = vset.pattern.permute.xlu0 0
  %368 = vperm.xlu0 %367, %v365
  %v369 = vpop.permute.xlu0 %368
  %v371 = vsub.f32 %v349, %v369
  %v372 = vsub.f32 %v352, %v369
  %v373 = vmul.f32 %v371, %v371
  %v374 = vmul.f32 %v372, %v372
  %v375 = vsel %vm161, %v373, 0.0
  %376 = vadd.xlane.f32.xlu0 %v375
  %v377 = vpop.xlane.xlu0 %376
  %v378 = vsel %vm161, %v374, 0.0
  %379 = vadd.xlane.f32.xlu0 %v378
  %v380 = vpop.xlane.xlu0 %379
  %v381 = vadd.f32 %v377, %v380
  %v382 = vmul.f32 %v381, %v208
  %v383 = vadd.f32 %v382, 1e-05
  %v384 = vrsqrt.pop %v383
  %v385 = vmul.f32 %v384, %v383
  %v386 = vmul.f32 %v385, %v384
  %v387 = vmul.f32 0.5, %v386
  %v388 = vsub.f32 1.5, %v387
  %v389 = vmul.f32 %v384, %v388
  %vm390 = vweird.f32 %v383
  %vm391 = vweird.f32 %v384
  %vm392 = vmor %vm390, %vm391
  %v393 = vsel %vm392, %v384, %v389
  %395 = vset.pattern.permute.xlu0 0
  %396 = vperm.xlu0 %395, %v393
  %v397 = vpop.permute.xlu0 %396
  %v399 = vmul.f32 %v371, %v397
  %v400 = vmul.f32 %v372, %v397
  %402 = vset.pattern.permute.xlu0 0
  %403 = vperm.xlu0 %402, %v354
  %v404 = vpop.permute.xlu0 %403
  %407 = vset.pattern.permute.xlu0 0
  %408 = vperm.xlu0 %407, %v355
  %v409 = vpop.permute.xlu0 %408
  %v411 = vmul.f32 %v399, %v404
  %v412 = vmul.f32 %v400, %v409
  %414 = vset.pattern.permute.xlu0 0
  %415 = vperm.xlu0 %414, %v356
  %v416 = vpop.permute.xlu0 %415
  %419 = vset.pattern.permute.xlu0 0
  %420 = vperm.xlu0 %419, %v357
  %v421 = vpop.permute.xlu0 %420
  %v423 = vadd.f32 %v411, %v416
  %v424 = vadd.f32 %v412, %v421
  %v425 = vmax.f32 %v423, 0.0
  %v426 = vmax.f32 %v424, 0.0
  %v427 = vld [vmem:[%s13] sm:$0xff]
  %v428 = vld [vmem:[%s14] sm:$0xff]
  %430 = vset.pattern.permute.xlu0 0
  %431 = vperm.xlu0 %430, %v428
  %v432 = vpop.permute.xlu0 %431
  %v435 = vsel %vm279, %v427, 0
  %437 = vmatpush.msra.mxu0 0.0
  %438 = vmatpush.msra.mxu0 0.0
  %439 = vmatpush.msra.mxu0 0.0
  %440 = vmatpush.msra.mxu0 0.0
  %441 = vmatpush.msra.mxu0 0.0
  %442 = vmatpush.msra.mxu0 0.0
  %443 = vmatpush.msra.mxu0 0.0
  %444 = vmatpush.msra.mxu0 0.0
  %445 = vmatpush.msra.mxu0 0.0
  %446 = vmatpush.msra.mxu0 0.0
  %447 = vmatpush.msra.mxu0 0.0
  %448 = vmatpush.msra.mxu0 0.0
  %449 = vmatpush.msra.mxu0 0.0
  %450 = vmatpush.msra.mxu0 0.0
  %451 = vmatpush.msra.mxu0 %v426
  %452 = vmatpush.msra.mxu0 %v425
  %453 = vmatmul.f32.gmra.mxu0 %v435
  %v454 = vpop.f32.mrf.mxu0
  %v455 = vadd.f32 %v432, %v454
  %456 = vdwg.mxu0
  %v458 = vsel %vm161, %v455, 0
  %460 = vmatpush.msra.mxu0 0.0
  %461 = vmatpush.msra.mxu0 0.0
  %462 = vmatpush.msra.mxu0 0.0
  %463 = vmatpush.msra.mxu0 0.0
  %464 = vmatpush.msra.mxu0 0.0
  %465 = vmatpush.msra.mxu0 0.0
  %466 = vmatpush.msra.mxu0 0.0
  %467 = vmatpush.msra.mxu0 0.0
  %468 = vmatpush.msra.mxu0 %v80
  %469 = vmatpush.msra.mxu0 %v79
  %470 = vmatpush.msra.mxu0 %v78
  %471 = vmatpush.msra.mxu0 %v77
  %472 = vmatpush.msra.mxu0 %v76
  %473 = vmatpush.msra.mxu0 %v75
  %474 = vmatpush.msra.mxu0 %v74
  %475 = vmatpush.msra.mxu0 %v73
  %476 = vmatmul.f32.gmra.mxu0 %v458
  %v477 = vpop.f32.mrf.mxu0
  %v478 = vadd.f32 0.0, %v477
  %479 = vdwg.mxu0
  %v480 = vld [vmem:[%s15] sm:$0xff]
  %v481 = vld [vmem:[%s16] sm:$0xff]
  %v482 = vsel %vm161, %v478, 0.0
  %483 = vadd.xlane.f32.xlu0 %v482
  %v484 = vpop.xlane.xlu0 %483
  %v486 = vrot.slane %v484, 4
  %v488 = vadd.f32 %v484, %v486
  %v489 = vmul.f32 %v488, %v208
  %v491 = vrot.slane %v489, 4
  %v493 = vsel %vm134, %v489, %v491
  %495 = vset.pattern.permute.xlu0 0
  %496 = vperm.xlu0 %495, %v493
  %v497 = vpop.permute.xlu0 %496
  %v499 = vsub.f32 %v478, %v497
  %v500 = vmul.f32 %v499, %v499
  %v501 = vsel %vm161, %v500, 0.0
  %502 = vadd.xlane.f32.xlu0 %v501
  %v503 = vpop.xlane.xlu0 %502
  %v505 = vrot.slane %v503, 4
  %v507 = vadd.f32 %v503, %v505
  %v508 = vmul.f32 %v507, %v208
  %v510 = vrot.slane %v508, 4
  %v512 = vsel %vm134, %v508, %v510
  %v513 = vadd.f32 %v512, 1e-05
  %v514 = vrsqrt.pop %v513
  %v515 = vmul.f32 %v514, %v513
  %v516 = vmul.f32 %v515, %v514
  %v517 = vmul.f32 0.5, %v516
  %v518 = vsub.f32 1.5, %v517
  %v519 = vmul.f32 %v514, %v518
  %vm520 = vweird.f32 %v513
  %vm521 = vweird.f32 %v514
  %vm522 = vmor %vm520, %vm521
  %v523 = vsel %vm522, %v514, %v519
  %525 = vset.pattern.permute.xlu0 0
  %526 = vperm.xlu0 %525, %v523
  %v527 = vpop.permute.xlu0 %526
  %v529 = vmul.f32 %v499, %v527
  %531 = vset.pattern.permute.xlu0 0
  %532 = vperm.xlu0 %531, %v480
  %v533 = vpop.permute.xlu0 %532
  %v535 = vmul.f32 %v529, %v533
  %537 = vset.pattern.permute.xlu0 0
  %538 = vperm.xlu0 %537, %v481
  %v539 = vpop.permute.xlu0 %538
  %v541 = vadd.f32 %v535, %v539
  %v542 = vmax.f32 %v541, 0.0
  %544 = vrot.lane.b32.xlu0 %v542, 16
  %v545 = vpop.permute.xlu0 %544
  %v547 = vsel %vm279, 0.0, %v545
  %v548 = vsel %vm282, %v547, 0.0
  %550 = vrot.lane.b32.xlu0 %v548, 120
  %v551 = vpop.permute.xlu0 %550
  %553 = vrot.lane.b32.xlu0 %v548, 112
  %v554 = vpop.permute.xlu0 %553
  %556 = vrot.lane.b32.xlu0 %v548, 104
  %v557 = vpop.permute.xlu0 %556
  %559 = vrot.lane.b32.xlu0 %v548, 96
  %v560 = vpop.permute.xlu0 %559
  %v562 = vld [vmem:[%s17] sm:$0xff]
  %v563 = vld [vmem:[%s18] sm:$0xff]
  %565 = vset.pattern.permute.xlu0 0
  %566 = vperm.xlu0 %565, %v563
  %v567 = vpop.permute.xlu0 %566
  %vm569 = vcmask 326656
  %v571 = vsel %vm569, %v562, 0
  %573 = vmatpush.msra.mxu0 0.0
  %574 = vmatpush.msra.mxu0 0.0
  %575 = vmatpush.msra.mxu0 0.0
  %576 = vmatpush.msra.mxu0 0.0
  %577 = vmatpush.msra.mxu0 0.0
  %578 = vmatpush.msra.mxu0 0.0
  %579 = vmatpush.msra.mxu0 0.0
  %580 = vmatpush.msra.mxu0 0.0
  %581 = vmatpush.msra.mxu0 0.0
  %582 = vmatpush.msra.mxu0 0.0
  %583 = vmatpush.msra.mxu0 0.0
  %584 = vmatpush.msra.mxu0 %v560
  %585 = vmatpush.msra.mxu0 %v557
  %586 = vmatpush.msra.mxu0 %v554
  %587 = vmatpush.msra.mxu0 %v551
  %588 = vmatpush.msra.mxu0 %v548
  %589 = vmatmul.f32.gmra.mxu0 %v571
  %v590 = vpop.f32.mrf.mxu0
  %v591 = vadd.f32 %v567, %v590
  %592 = vdwg.mxu0
  %v593 = vld [vmem:[%s19] sm:$0xff]
  %v594 = vld [vmem:[%s20] sm:$0xff]
  %v595 = vsel %vm161, %v591, 0.0
  %596 = vadd.xlane.f32.xlu0 %v595
  %v597 = vpop.xlane.xlu0 %596
  %v599 = vrot.slane %v597, 4
  %v601 = vadd.f32 %v597, %v599
  %v602 = vmul.f32 %v601, %v208
  %v604 = vrot.slane %v602, 4
  %v606 = vsel %vm134, %v602, %v604
  %608 = vset.pattern.permute.xlu0 0
  %609 = vperm.xlu0 %608, %v606
  %v610 = vpop.permute.xlu0 %609
  %v612 = vsub.f32 %v591, %v610
  %v613 = vmul.f32 %v612, %v612
  %v614 = vsel %vm161, %v613, 0.0
  %615 = vadd.xlane.f32.xlu0 %v614
  %v616 = vpop.xlane.xlu0 %615
  %v618 = vrot.slane %v616, 4
  %v620 = vadd.f32 %v616, %v618
  %v621 = vmul.f32 %v620, %v208
  %v623 = vrot.slane %v621, 4
  %v625 = vsel %vm134, %v621, %v623
  %v626 = vadd.f32 %v625, 1e-05
  %v627 = vrsqrt.pop %v626
  %v628 = vmul.f32 %v627, %v626
  %v629 = vmul.f32 %v628, %v627
  %v630 = vmul.f32 0.5, %v629
  %v631 = vsub.f32 1.5, %v630
  %v632 = vmul.f32 %v627, %v631
  %vm633 = vweird.f32 %v626
  %vm634 = vweird.f32 %v627
  %vm635 = vmor %vm633, %vm634
  %v636 = vsel %vm635, %v627, %v632
  %638 = vset.pattern.permute.xlu0 0
  %639 = vperm.xlu0 %638, %v636
  %v640 = vpop.permute.xlu0 %639
  %v642 = vmul.f32 %v612, %v640
  %644 = vset.pattern.permute.xlu0 0
  %645 = vperm.xlu0 %644, %v593
  %v646 = vpop.permute.xlu0 %645
  %v648 = vmul.f32 %v642, %v646
  %650 = vset.pattern.permute.xlu0 0
  %651 = vperm.xlu0 %650, %v594
  %v652 = vpop.permute.xlu0 %651
  %v654 = vadd.f32 %v648, %v652
  %v655 = vmax.f32 %v654, 0.0
  %v657 = vrot.slane %v655, 1
  %v659 = vrot.slane %v655, 2
  %v661 = vrot.slane %v655, 3
  %v663 = vsel %vm102, %v655, %v657
  %v664 = vsel %vm104, %v663, %v659
  %v665 = vsel %vm106, %v664, %v661
  %v666 = vrot.slane %v655, 4
  %v668 = vsel %vm102, %v657, %v659
  %v669 = vsel %vm104, %v668, %v661
  %v670 = vsel %vm106, %v669, %v666
  %v671 = vadd.f32 %v670, 2.0
  %v672 = vsub.f32 0.0, %v671
  %v673 = vmul.f32 %v672, 1.442695
  %v674 = vpow.pop %v673
  %v675 = vadd.f32 %v674, 1.0
  %v676 = vrcp.pop %v675
  %v677 = vmul.f32 %v675, %v676
  %v678 = vsub.f32 1.0, %v677
  %v679 = vmul.f32 %v676, %v678
  %v680 = vadd.f32 %v676, %v679
  %vm681 = vweird.f32 %v675
  %vm682 = vweird.f32 %v676
  %vm683 = vmor %vm681, %vm682
  %v684 = vsel %vm683, %v676, %v680
  %v685 = vand.u32 2147483647, %v675
  %vm686 = vcmp.eq.f32.partialorder %v685, 8.507059e+37
  %v687 = vand.u32 %v675, 2147483648
  %v688 = vor.u32 1.1754944e-38, %v687
  %v689 = vsel %vm686, %v688, %v684
  %v690 = vmul.f32 1.0, %v689
  %v691 = vadd.f32 %v690, 1e-06
  %v692 = vadd.f32 %v112, %v665
  %v693 = vmul.f32 %v692, %v691
  %v694 = vlog2.pop %v691
  %v695 = vmul.f32 %v694, 0.6931472
  %v697 = vrot.slane %v693, 6
  %v699 = vsel %vm104, %v107, %v697
  %v700 = vrot.slane %v107, 2
  %v702 = vsel %vm104, %v700, %v693
  %v704 = vrot.slane %v702, 4
  %v706 = vsel %vm134, %v699, %v704
  %707 = vst.msk [vmem:[%s21] sm:$0xff] %vm161, %v706
  %v708 = vld [vmem:[#allocation2] sm:$0x1]
  %vm709 = vcmask 517120
  %v710 = vsel %vm709, %v695, 0.0
  %711 = vadd.xlane.f32.xlu0 %v710
  %v712 = vpop.xlane.xlu0 %711
  %v713 = vsel %vm104, %v712, 0.0
  %v714 = vrot.slane %v713, 4
  %v715 = vadd.f32 %v713, %v714
  %v716 = vrot.slane %v715, 2
  %v717 = vadd.f32 %v715, %v716
  %v718 = vrot.slane %v717, 1
  %v719 = vadd.f32 %v717, %v718
  %v720 = vmul.f32 %v706, %v706
  %vm721 = vcmask 519168
  %v722 = vsel %vm721, %v720, 0.0
  %723 = vadd.xlane.f32.xlu0 %v722
  %v724 = vpop.xlane.xlu0 %723
  %v725 = vsel %vm134, %v724, 0.0
  %v726 = vrot.slane %v725, 4
  %v727 = vadd.f32 %v725, %v726
  %v728 = vrot.slane %v727, 2
  %v729 = vadd.f32 %v727, %v728
  %v730 = vrot.slane %v729, 1
  %v731 = vadd.f32 %v729, %v730
  %v732 = vadd.f32 %v708, %v719
  %v733 = vadd.f32 %v731, 470.49652
  %v734 = vmul.f32 %v733, 0.5
  %v735 = vsub.f32 %v732, %v734
  %v736 = vsub.f32 0.0, %v735
  %v737 = vrcp.pop 177.44568
  %v738 = vmul.f32 177.44568, %v737
  %v739 = vsub.f32 1.0, %v738
  %v740 = vmul.f32 %v737, %v739
  %v741 = vadd.f32 %v737, %v740
  %vm742 = vweird.f32 %v737
  %v743 = vsel %vm742, %v737, %v741
  %v744 = vmul.f32 %v736, %v743
  %vm745 = vcmask 519170
  %v746 = vsel %vm745, %v695, 0.0
  %747 = vadd.xlane.f32.xlu0 %v746
  %v748 = vpop.xlane.xlu0 %747
  %v750 = vrot.slane %v748, 2
  %v752 = vsel %vm104, %v750, 0.0
  %v753 = vrot.slane %v752, 4
  %v754 = vadd.f32 %v752, %v753
  %v755 = vrot.slane %v754, 2
  %v756 = vadd.f32 %v754, %v755
  %v757 = vrot.slane %v756, 1
  %v758 = vadd.f32 %v756, %v757
  %vm759 = vcmask 523268
  %v760 = vsel %vm759, %v720, 0.0
  %761 = vadd.xlane.f32.xlu0 %v760
  %v762 = vpop.xlane.xlu0 %761
  %v764 = vrot.slane %v762, 4
  %v766 = vsel %vm134, %v764, 0.0
  %v767 = vrot.slane %v766, 4
  %v768 = vadd.f32 %v766, %v767
  %v769 = vrot.slane %v768, 2
  %v770 = vadd.f32 %v768, %v769
  %v771 = vrot.slane %v770, 1
  %v772 = vadd.f32 %v770, %v771
  %v773 = vadd.f32 %v708, %v758
  %v774 = vadd.f32 %v772, 470.49652
  %v775 = vmul.f32 %v774, 0.5
  %v776 = vsub.f32 %v773, %v775
  %v777 = vsub.f32 0.0, %v776
  %v778 = vmul.f32 %v777, %v743
  %v780 = vperm.slane %v778, 0
  %v782 = vsel %vm102, %v744, %v780
  %vm783 = vcmask 1024
  %784 = vst.msk [vmem:[%s22] sm:$0x3] %vm783, %v782
  // Predicated region
  $region86: #{dcbf_normal_flow.1} parent=0 // pred_check
    _
  $region87: #{dcbf_normal_flow.1} parent=0 // pred_check_branch
    %786 = sbr.rel (0) target = $region89
  $region88: #{dcbf_normal_flow.1} parent=0 // pred_region
    _
  $region89: #{dcbf_normal_flow.1} parent=0 // pred_fallthru
    _
  // Predicated region
  $region90: #{dcbf_normal_flow.1} parent=0 // pred_check
    _
  $region91: #{dcbf_normal_flow.1} parent=0 // pred_check_branch
    %788 = sbr.rel (0) target = $region93
  $region92: #{dcbf_normal_flow.1} parent=0 // pred_region
    _
  $region93: #{dcbf_normal_flow.1} parent=0 // pred_fallthru
    _
  // Predicated region
  $region94: #{dcbf_normal_flow.1} parent=0 // pred_check
    _
  $region95: #{dcbf_normal_flow.1} parent=0 // pred_check_branch
    %790 = sbr.rel (0) target = $region97
  $region96: #{dcbf_normal_flow.1} parent=0 // pred_region
    _
  $region97: #{dcbf_normal_flow.1} parent=0 // pred_fallthru
    _
  // Predicated region
  $region98: #{dcbf_normal_flow.1} parent=0 // pred_check
    _
  $region99: #{dcbf_normal_flow.1} parent=0 // pred_check_branch
    %792 = sbr.rel (0) target = $region101
  $region100: #{dcbf_normal_flow.1} parent=0 // pred_region
    _
  $region101: #{dcbf_normal_flow.1} parent=0 // pred_fallthru
    _

</llo_original>
